<compile_context>
chip_gen: v7x
topology: tpu7x:2x2x1
jax: 0.10.0
libtpu: 0.0.40
codegen_flags: <defaults>
</compile_context>

<pallas_src>
import numpy as np
import jax
import jax.numpy as jnp
from jax.experimental import pallas as pl
from jax.experimental.pallas import tpu as pltpu

_LANES = 128


def _round_up(x: int, m: int) -> int:
    return -(-x // m) * m


def _time_encoder_kernel(t_ref, e_ref, scale_ref, phase_ref, out_ref):
    """One row-tile of TimeEncoder.

    t_ref:     [TILE_R, 128]    f32  time values, one per lane
    e_ref:     [128, 128*dim]   bf16 0/1 interleave matrix, E[l, dim*l + d] = 1
    scale_ref: [1, 128*dim]     f32  lane-periodic frequencies (inv[d % half])
    phase_ref: [1, 128*dim]     f32  0 for sin channels, pi/2 for cos channels
    out_ref:   [TILE_R, 128*dim]     out[r, dim*l + d] = sin/cos(t[r, l] * inv[...])
    """
    t = t_ref[...]
    # nan_to_num(nan=0, posinf=0, neginf=0): only finite values pass through.
    t = jnp.where(jnp.abs(t) < jnp.float32(np.inf), t, jnp.float32(0.0))

    # Exact 3-way bf16 split (8+8+8 mantissa bits) so the 0/1-matrix matmuls below
    # reproduce t in float32 exactly, independent of MXU f32 precision modes.
    t0 = t.astype(jnp.bfloat16)
    r1 = t - t0.astype(jnp.float32)
    t1 = r1.astype(jnp.bfloat16)
    t2 = (r1 - t1.astype(jnp.float32)).astype(jnp.bfloat16)

    # Lane interleave on the (otherwise idle) MXU: t_bc[:, dim*l + d] == t[:, l].
    e = e_ref[...]
    t_bc = jnp.dot(t0, e, preferred_element_type=jnp.float32)
    t_bc += jnp.dot(t1, e, preferred_element_type=jnp.float32)
    t_bc += jnp.dot(t2, e, preferred_element_type=jnp.float32)

    # freqs = t * inv[channel]; cos(x) emitted as sin(x + pi/2) -> exactly one
    # transcendental per output element.  Single lane-dense (128*dim wide) store.
    # TODO(synk): if bundle dumps show sin lowering to a VPU polynomial (VALU-bound),
    # a shared-range-reduction sin/cos approximation would be the next lever.
    freqs = t_bc * scale_ref[...] + phase_ref[...]
    out_ref[...] = jnp.sin(freqs).astype(out_ref.dtype)


def time_encoder(t, dim=8, max_tile_rows=2048, out_dtype=jnp.float32):
    """Pallas TimeEncoder: cat([sin(t*inv), cos(t*inv)], -1), shape t.shape + (dim,)."""
    assert dim % 2 == 0 and dim >= 2
    half = dim // 2
    lanes_out = _LANES * dim

    orig_shape = tuple(t.shape)
    flat = jnp.reshape(t, (-1,)).astype(jnp.float32)
    n = int(flat.shape[0])
    if n == 0:  # empty-input guard
        return jnp.zeros(orig_shape + (dim,), out_dtype)

    # Static tables (host-built, tiny). inv computed in float32 like the torch buffer.
    inv = (1.0 / np.power(np.float32(8.0),
                          np.linspace(0.0, 4.0, half, dtype=np.float32))
           ).astype(np.float32)
    e_mat = jnp.asarray(
        np.kron(np.eye(_LANES, dtype=np.float32), np.ones((1, dim), np.float32)),
        jnp.bfloat16)                                                  # [128, 128*dim]
    scale = jnp.asarray(np.tile(np.concatenate([inv, inv]), _LANES)[None, :],
                        jnp.float32)                                   # [1, 128*dim]
    phase = jnp.asarray(
        np.tile(np.array([0.0] * half + [np.pi / 2] * half, np.float32),
                _LANES)[None, :], jnp.float32)                         # [1, 128*dim]

    # Lay time values across lanes; pad only when the flat size isn't 128-aligned.
    rows = -(-n // _LANES)
    n_pad = rows * _LANES
    if n_pad != n:
        flat = jnp.pad(flat, (0, n_pad - n))
    t2d = flat.reshape(rows, _LANES)

    # Row-axis tiling: big tiles amortize the ~0.35us per-grid-step overhead, but
    # clamp so there are >= 2 grid steps when possible (both v7x TensorCores get
    # work) and the double-buffered working set stays under scoped-VMEM limits.
    max_tile_rows = max(8, min(int(max_tile_rows), 2048))
    if rows < 16 and rows <= max_tile_rows:
        tile_rows = rows                         # tiny input: single exact-fit block
    else:
        tile_rows = max(8, min(max_tile_rows, _round_up(-(-rows // 2), 8)))
    grid = (pl.cdiv(rows, tile_rows),)

    out_itemsize = np.dtype(out_dtype).itemsize
    in_block = tile_rows * _LANES * 4
    out_block = tile_rows * lanes_out * out_itemsize
    const_bytes = int(e_mat.size) * 2 + (int(scale.size) + int(phase.size)) * 4
    vmem_needed = 2 * (in_block + out_block) + 2 * const_bytes
    vmem_limit = min(max(int(vmem_needed * 1.5) + (4 << 20), 16 << 20), 32 << 20)

    out = pl.pallas_call(
        _time_encoder_kernel,
        out_shape=jax.ShapeDtypeStruct((rows, lanes_out), out_dtype),
        grid=grid,
        in_specs=[
            pl.BlockSpec((tile_rows, _LANES), lambda i: (i, 0)),
            pl.BlockSpec((_LANES, lanes_out), lambda i: (0, 0)),   # E (resident)
            pl.BlockSpec((1, lanes_out), lambda i: (0, 0)),        # scale (resident)
            pl.BlockSpec((1, lanes_out), lambda i: (0, 0)),        # phase (resident)
        ],
        out_specs=pl.BlockSpec((tile_rows, lanes_out), lambda i: (i, 0)),
        compiler_params=pltpu.CompilerParams(
            dimension_semantics=("parallel",),
            vmem_limit_bytes=vmem_limit,
        ),
        cost_estimate=pl.CostEstimate(
            flops=6 * rows * _LANES * lanes_out + 4 * rows * lanes_out,
            transcendentals=rows * lanes_out,
            bytes_accessed=4 * rows * _LANES + rows * lanes_out * out_itemsize,
        ),
    )(t2d, e_mat, scale, phase)

    # Free row-major reinterpretation: [rows, 128*dim] -> [rows*128, dim] = [N_pad, dim].
    out = out.reshape(n_pad, dim)
    if n_pad != n:
        out = out[:n]
    return out.reshape(orig_shape + (dim,))


def _reference(t, dim=8):
    half = dim // 2
    inv = jnp.asarray(
        1.0 / np.power(np.float32(8.0), np.linspace(0.0, 4.0, half, dtype=np.float32)),
        jnp.float32)
    t = jnp.where(jnp.isfinite(t), t, 0.0).astype(jnp.float32)
    freqs = t[..., None] * inv
    return jnp.concatenate([jnp.sin(freqs), jnp.cos(freqs)], axis=-1)


if __name__ == "__main__":
    DIM = 8

    # Case 1: 128-aligned numel (no pad / no slice), two even grid tiles, with
    # nan/inf entries to exercise the nan_to_num path.
    t1 = jax.random.normal(jax.random.PRNGKey(0), (8, 256), dtype=jnp.float32) * 3.0
    t1 = t1.at[0, 0].set(jnp.nan)
    t1 = t1.at[0, 1].set(jnp.inf)
    t1 = t1.at[1, 0].set(-jnp.inf)

    enc1 = jax.block_until_ready(time_encoder(t1, dim=DIM))
    ref1 = _reference(t1, dim=DIM)
    assert enc1.shape == (8, 256, DIM)
    assert jnp.allclose(enc1, ref1, atol=1e-4, rtol=1e-4), "case 1 mismatch"

    # Case 2: unaligned numel (pad + tail slice) and a ragged last grid block.
    t2 = jax.random.normal(jax.random.PRNGKey(1), (7, 300), dtype=jnp.float32) * 2.0
    enc2 = jax.block_until_ready(time_encoder(t2, dim=DIM))
    ref2 = _reference(t2, dim=DIM)
    assert enc2.shape == (7, 300, DIM)
    assert jnp.allclose(enc2, ref2, atol=1e-4, rtol=1e-4), "case 2 mismatch"

    print("KERNEL_OK")
</pallas_src>

<mosaic_0001>
module attributes {stable_mosaic.version = 11 : i64} {
  func.func @_time_encoder_kernel(%arg0: i32, %arg1: memref<8x128xf32, #tpu.memory_space<vmem>>, %arg2: memref<128x1024xbf16, #tpu.memory_space<vmem>>, %arg3: memref<1x1024xf32, #tpu.memory_space<vmem>>, %arg4: memref<1x1024xf32, #tpu.memory_space<vmem>>, %arg5: memref<8x1024xf32, #tpu.memory_space<vmem>>) attributes {dimension_semantics = [#tpu.dimension_semantics<parallel>], iteration_bounds = array<i64: 2>, scalar_prefetch = 0 : i64, scratch_operands = 0 : i64, tpu.core_type = #tpu.core_type<tc>, window_params = [{transform_indices = @transform_0, window_bounds = array<i64: 8, 128>}, {pipeline_mode = #tpu.pipeline_mode<synchronous>, transform_indices = @transform_1, window_bounds = array<i64: 128, 1024>}, {pipeline_mode = #tpu.pipeline_mode<synchronous>, transform_indices = @transform_2, window_bounds = array<i64: 1, 1024>}, {pipeline_mode = #tpu.pipeline_mode<synchronous>, transform_indices = @transform_3, window_bounds = array<i64: 1, 1024>}, {transform_indices = @transform_4, window_bounds = array<i64: 8, 1024>}]} {
    %c0 = arith.constant 0 : index
    %c0_0 = arith.constant 0 : index
    %0 = vector.load %arg1[%c0, %c0_0] : memref<8x128xf32, #tpu.memory_space<vmem>>, vector<8x128xf32>
    %1 = math.absf %0 : vector<8x128xf32>
    %cst = arith.constant 0x7F800000 : f32
    %2 = vector.broadcast %cst : f32 to vector<8x128xf32>
    %3 = arith.cmpf olt, %1, %2 : vector<8x128xf32>
    %cst_1 = arith.constant 0.000000e+00 : f32
    %4 = vector.broadcast %cst_1 : f32 to vector<8x128xf32>
    %5 = arith.select %3, %0, %4 : vector<8x128xi1>, vector<8x128xf32>
    %6 = arith.truncf %5 : vector<8x128xf32> to vector<8x128xbf16>
    %7 = arith.extf %6 : vector<8x128xbf16> to vector<8x128xf32>
    %8 = arith.subf %5, %7 : vector<8x128xf32>
    %9 = arith.truncf %8 : vector<8x128xf32> to vector<8x128xbf16>
    %10 = arith.extf %9 : vector<8x128xbf16> to vector<8x128xf32>
    %11 = arith.subf %8, %10 : vector<8x128xf32>
    %12 = arith.truncf %11 : vector<8x128xf32> to vector<8x128xbf16>
    %c0_2 = arith.constant 0 : index
    %c0_3 = arith.constant 0 : index
    %13 = vector.load %arg2[%c0_2, %c0_3] : memref<128x1024xbf16, #tpu.memory_space<vmem>>, vector<128x1024xbf16>
    %cst_4 = arith.constant dense<0.000000e+00> : vector<8x1024xf32>
    %14 = tpu.matmul %6, %13, %cst_4 {dimension_numbers = #tpu.dot_dimension_numbers<[1], [0], [0], [1], [0, 0, 1, 1], [], []>} : vector<8x128xbf16>, vector<128x1024xbf16>, vector<8x1024xf32> -> vector<8x1024xf32>
    %cst_5 = arith.constant dense<0.000000e+00> : vector<8x1024xf32>
    %15 = tpu.matmul %9, %13, %cst_5 {dimension_numbers = #tpu.dot_dimension_numbers<[1], [0], [0], [1], [0, 0, 1, 1], [], []>} : vector<8x128xbf16>, vector<128x1024xbf16>, vector<8x1024xf32> -> vector<8x1024xf32>
    %16 = arith.addf %14, %15 : vector<8x1024xf32>
    %cst_6 = arith.constant dense<0.000000e+00> : vector<8x1024xf32>
    %17 = tpu.matmul %12, %13, %cst_6 {dimension_numbers = #tpu.dot_dimension_numbers<[1], [0], [0], [1], [0, 0, 1, 1], [], []>} : vector<8x128xbf16>, vector<128x1024xbf16>, vector<8x1024xf32> -> vector<8x1024xf32>
    %18 = arith.addf %16, %17 : vector<8x1024xf32>
    %c0_7 = arith.constant 0 : index
    %c0_8 = arith.constant 0 : index
    %19 = vector.load %arg3[%c0_7, %c0_8] : memref<1x1024xf32, #tpu.memory_space<vmem>>, vector<1x1024xf32>
    %20 = vector.broadcast %19 : vector<1x1024xf32> to vector<8x1024xf32>
    %21 = arith.mulf %18, %20 : vector<8x1024xf32>
    %c0_9 = arith.constant 0 : index
    %c0_10 = arith.constant 0 : index
    %22 = vector.load %arg4[%c0_9, %c0_10] : memref<1x1024xf32, #tpu.memory_space<vmem>>, vector<1x1024xf32>
    %23 = vector.broadcast %22 : vector<1x1024xf32> to vector<8x1024xf32>
    %24 = arith.addf %21, %23 : vector<8x1024xf32>
    %25 = math.sin %24 : vector<8x1024xf32>
    %c0_11 = arith.constant 0 : index
    %c0_12 = arith.constant 0 : index
    %26 = vector.load %arg5[%c0_11, %c0_12] : memref<8x1024xf32, #tpu.memory_space<vmem>>, vector<8x1024xf32>
    tpu.vector_store %arg5[%c0_11, %c0_12], %25 {strides = array<i32>} : memref<8x1024xf32, #tpu.memory_space<vmem>>, vector<8x1024xf32>,
    return
  }
  func.func @transform_0(%arg0: i32) -> (i32, i32) {
    %c0_i32 = arith.constant 0 : i32
    %c0_i32_0 = arith.constant 0 : i32
    return %arg0, %c0_i32 : i32, i32
  }
  func.func @transform_1(%arg0: i32) -> (i32, i32) {
    %c0_i32 = arith.constant 0 : i32
    %c0_i32_0 = arith.constant 0 : i32
    %c0_i32_1 = arith.constant 0 : i32
    return %c0_i32, %c0_i32_0 : i32, i32
  }
  func.func @transform_2(%arg0: i32) -> (i32, i32) {
    %c0_i32 = arith.constant 0 : i32
    %c0_i32_0 = arith.constant 0 : i32
    %c0_i32_1 = arith.constant 0 : i32
    return %c0_i32, %c0_i32_0 : i32, i32
  }
  func.func @transform_3(%arg0: i32) -> (i32, i32) {
    %c0_i32 = arith.constant 0 : i32
    %c0_i32_0 = arith.constant 0 : i32
    %c0_i32_1 = arith.constant 0 : i32
    return %c0_i32, %c0_i32_0 : i32, i32
  }
  func.func @transform_4(%arg0: i32) -> (i32, i32) {
    %c0_i32 = arith.constant 0 : i32
    %c0_i32_0 = arith.constant 0 : i32
    return %arg0, %c0_i32 : i32, i32
  }
}

</mosaic_0001>

<llo_original>
// kernel: tpu_custom_call.1
$region0: #{tpu_custom_call.1}
  #allocation0 [shape = 'u32[]', space=smem, size = 0x4, offset = 0x4, fixed_abs, tag = 'smem constant byte address 0x4 - core index']
  #allocation1 [shape = 'u32[144,128]{1,0:T(1,128)}', space=vmem, size = 0x12000, scoped, tag = 'internal scratch']
  %s0 = inlined_call_operand.hbm [shape: f32[16,128], index: 0, kind: input, shape index: {}]
  %s1 = inlined_call_operand.hbm [shape: bf16[128,1024], index: 1, kind: input, shape index: {}]
  %s2 = inlined_call_operand.hbm [shape: f32[1,1024], index: 2, kind: input, shape index: {}]
  %s3 = inlined_call_operand.vmem [shape: f32[1,1024], index: 3, kind: input, shape index: {}]
  %s4 = inlined_call_operand.hbm [shape: f32[16,1024], index: 4, kind: output, shape index: {}]
  %s5 = sld [smem:[#allocation0]]
  $region61: #{tpu_custom_call.1} parent=0
    _
  %s7 = ssub.s32 1, %s5
  %s8 = scalar_select 0, %s7, %s5
  $region1: #{tpu_custom_call.1} parent=0
    #allocation2 [shape = 'u8[8192]{0}', space=vmem, size = 0x2000, scoped, tag = 'input window, operand 0']
    #allocation3 [shape = 's32[2]{0}', space=sflag, size = 0x8, scoped, tag = 'scoped memory for tpu_custom_call.1']
    #allocation4 [shape = 's32[2]{0}', space=sflag, size = 0x8, scoped, tag = 'scoped memory for tpu_custom_call.1']
    #allocation5 [shape = 'u8[262144]{0}', space=vmem, size = 0x40000, scoped, tag = 'input window, operand 1, single buffered']
    #allocation6 [shape = 's32[1]{0}', space=sflag, size = 0x4, scoped, tag = 'scoped memory for tpu_custom_call.1']
    #allocation7 [shape = 'u8[4096]{0}', space=vmem, size = 0x1000, scoped, tag = 'input window, operand 2, single buffered']
    #allocation8 [shape = 'u8[65536]{0}', space=vmem, size = 0x10000, scoped, tag = 'output window, operand 0']
    %9 = vsyncpa [#allocation3], 0
    %s10 = scalar_lea.sflag [#allocation3], 1
    %11 = vsyncpa %s10, 0
    %12 = vsyncpa [#allocation6], 0
    %13 = vsyncpa [#allocation4], 0
    %s14 = scalar_lea.sflag [#allocation4], 1
    %15 = vsyncpa %s14, 0
    loop: start=0, step=1, limit=4
    $region2: #{tpu_custom_call.1} parent=1 // loop_pre_header
      _
    $region3: #{tpu_custom_call.1} parent=1 // loop_header
      %s17 = sphi 0, %s21
      %p18 = scmp.ge.s32.totalorder %s17, 4
      %s27 = sphi 0, %s29
      %s30 = sphi 0, %s27
      %s31 = sphi 0, %s30
      %s47 = sphi 0, %s31
      %s51 = sphi 0, %s51
      %s53 = sphi 0, %s51
      %s54 = sphi 0, %s53
      %s68 = sphi 0, %s54
      %s72 = sphi 0, %s72
      %s74 = sphi 0, %s72
      %s75 = sphi 0, %s74
      %s89 = sphi 0, %s75
      %s93 = sphi 0, %s93
      %s95 = sphi 0, %s93
      %s96 = sphi 0, %s95
      %s110 = sphi 0, %s96
      %s116 = sphi 0, %s118
      %s119 = sphi 0, %s116
      %s120 = sphi 0, %s119
      %s136 = sphi 0, %s120
    $region4: #{tpu_custom_call.1} parent=1 // loop_header_branch
      %20 = sbr.rel (%p18) target = $region8
    $region5: #{tpu_custom_call.1} parent=1 // loop_body
      %s22 = ssub.s32 %s17, 1
      %s23 = ssub.s32 %s17, 2
      %s24 = sadd.s32 %s17, 1
      %s25 = ssub.s32 %s17, %s24
      %p26 = scmp.eq.s32.totalorder %s25, 0
      %s28 = sadd.s32 %s27, 1
      %s29 = scalar_select %p26, %s27, %s28
      %p32 = pneg %p26
      %p33 = scmp.eq.s32.totalorder %s17, 1
      %p34 = por %p32, %p33
      %p35 = scmp.ne.s32.totalorder %s27, %s30
      %p36 = scmp.eq.s32.totalorder %s17, 0
      %p37 = por %p35, %p36
      %p38 = scmp.ne.s32.totalorder %s27, %s30
      %p39 = scmp.eq.s32.totalorder %s22, 1
      %p40 = por %p38, %p39
      %p41 = scmp.ne.s32.totalorder %s30, %s31
      %p42 = scmp.eq.s32.totalorder %s22, 0
      %p43 = por %p41, %p42
      %p44 = scmp.ne.s32.totalorder %s30, %s31
      %p45 = scmp.eq.s32.totalorder %s23, 1
      %p46 = por %p44, %p45
      %p48 = scmp.ne.s32.totalorder %s31, %s47
      %p49 = scmp.eq.s32.totalorder %s23, 0
      %p50 = por %p48, %p49
      %s52 = sadd.s32 %s51, 1
      %p55 = scmp.eq.s32.totalorder %s17, 1
      %p56 = scmp.ne.s32.totalorder %s51, %s53
      %p57 = scmp.eq.s32.totalorder %s17, 0
      %p58 = por %p56, %p57
      %p59 = scmp.ne.s32.totalorder %s51, %s53
      %p60 = scmp.eq.s32.totalorder %s22, 1
      %p61 = por %p59, %p60
      %p62 = scmp.ne.s32.totalorder %s53, %s54
      %p63 = scmp.eq.s32.totalorder %s22, 0
      %p64 = por %p62, %p63
      %p65 = scmp.ne.s32.totalorder %s53, %s54
      %p66 = scmp.eq.s32.totalorder %s23, 1
      %p67 = por %p65, %p66
      %p69 = scmp.ne.s32.totalorder %s54, %s68
      %p70 = scmp.eq.s32.totalorder %s23, 0
      %p71 = por %p69, %p70
      %s73 = sadd.s32 %s72, 1
      %p76 = scmp.eq.s32.totalorder %s17, 1
      %p77 = scmp.ne.s32.totalorder %s72, %s74
      %p78 = scmp.eq.s32.totalorder %s17, 0
      %p79 = por %p77, %p78
      %p80 = scmp.ne.s32.totalorder %s72, %s74
      %p81 = scmp.eq.s32.totalorder %s22, 1
      %p82 = por %p80, %p81
      %p83 = scmp.ne.s32.totalorder %s74, %s75
      %p84 = scmp.eq.s32.totalorder %s22, 0
      %p85 = por %p83, %p84
      %p86 = scmp.ne.s32.totalorder %s74, %s75
      %p87 = scmp.eq.s32.totalorder %s23, 1
      %p88 = por %p86, %p87
      %p90 = scmp.ne.s32.totalorder %s75, %s89
      %p91 = scmp.eq.s32.totalorder %s23, 0
      %p92 = por %p90, %p91
      %s94 = sadd.s32 %s93, 1
      %p97 = scmp.eq.s32.totalorder %s17, 1
      %p98 = scmp.ne.s32.totalorder %s93, %s95
      %p99 = scmp.eq.s32.totalorder %s17, 0
      %p100 = por %p98, %p99
      %p101 = scmp.ne.s32.totalorder %s93, %s95
      %p102 = scmp.eq.s32.totalorder %s22, 1
      %p103 = por %p101, %p102
      %p104 = scmp.ne.s32.totalorder %s95, %s96
      %p105 = scmp.eq.s32.totalorder %s22, 0
      %p106 = por %p104, %p105
      %p107 = scmp.ne.s32.totalorder %s95, %s96
      %p108 = scmp.eq.s32.totalorder %s23, 1
      %p109 = por %p107, %p108
      %p111 = scmp.ne.s32.totalorder %s96, %s110
      %p112 = scmp.eq.s32.totalorder %s23, 0
      %p113 = por %p111, %p112
      %s114 = ssub.s32 %s17, %s24
      %p115 = scmp.eq.s32.totalorder %s114, 0
      %s117 = sadd.s32 %s116, 1
      %s118 = scalar_select %p115, %s116, %s117
      %p121 = pneg %p115
      %p122 = scmp.eq.s32.totalorder %s17, 1
      %p123 = por %p121, %p122
      %p124 = scmp.ne.s32.totalorder %s116, %s119
      %p125 = scmp.eq.s32.totalorder %s17, 0
      %p126 = por %p124, %p125
      %p127 = scmp.ne.s32.totalorder %s116, %s119
      %p128 = scmp.eq.s32.totalorder %s22, 1
      %p129 = por %p127, %p128
      %p130 = scmp.ne.s32.totalorder %s119, %s120
      %p131 = scmp.eq.s32.totalorder %s22, 0
      %p132 = por %p130, %p131
      %p133 = scmp.ne.s32.totalorder %s119, %s120
      %p134 = scmp.eq.s32.totalorder %s23, 1
      %p135 = por %p133, %p134
      %p137 = scmp.ne.s32.totalorder %s120, %s136
      %p138 = scmp.eq.s32.totalorder %s23, 0
      %p139 = por %p137, %p138
      %p140 = scmp.le.s32.totalorder 1, %s17
      %p141 = scmp.lt.s32.totalorder %s17, 3
      %p142 = pnand %p140, %p141
      %p143 = pneg %p142
      // Predicated region
      $region9: #{tpu_custom_call.1} parent=5 // pred_check
        _
      $region10: #{tpu_custom_call.1} parent=5 // pred_check_branch
        %145 = sbr.rel (%p142) target = $region12
      $region11: #{tpu_custom_call.1} parent=5 // pred_region
        %s146 = ssub.s32 %s17, 1
        // Predicated region
        $region13: #{tpu_custom_call.1} parent=11 // pred_check
          %p147 = pneg %p64
        $region14: #{tpu_custom_call.1} parent=11 // pred_check_branch
          %149 = sbr.rel (%p147) target = $region16
        $region15: #{tpu_custom_call.1} parent=11 // pred_region
          %s151 = ssub.s32 8192, 8192
          %152 = vsyncadd [#allocation6], %s151
          %s153 = sshll.u32 [#allocation5], 4
          %s154 = int_to_ptr.vmem [resolvable:$true] %s153
          %159 = dma.hbm_to_vmem [thread:$0]  %s1, 8192, %s154, [#allocation6], 512, 512, 32
        $region16: #{tpu_custom_call.1} parent=11 // pred_fallthru
          _
        // Predicated region
        $region17: #{tpu_custom_call.1} parent=11 // pred_check
          %p160 = pneg %p85
        $region18: #{tpu_custom_call.1} parent=11 // pred_check_branch
          %162 = sbr.rel (%p160) target = $region20
        $region19: #{tpu_custom_call.1} parent=11 // pred_region
          %s164 = ssub.s32 128, 128
          %165 = vsyncadd [#allocation6], %s164
          %s167 = sshll.u32 [#allocation7], 4
          %s168 = int_to_ptr.vmem [resolvable:$true] %s167
          %170 = dma.hbm_to_vmem [thread:$0]  %s2, 128, %s168, [#allocation6]
        $region20: #{tpu_custom_call.1} parent=11 // pred_fallthru
          _
        // Predicated region
        $region21: #{tpu_custom_call.1} parent=11 // pred_check
          %p171 = pneg %p106
        $region22: #{tpu_custom_call.1} parent=11 // pred_check_branch
          %173 = sbr.rel (%p171) target = $region24
        $region23: #{tpu_custom_call.1} parent=11 // pred_region
          _
        $region24: #{tpu_custom_call.1} parent=11 // pred_fallthru
          _
      $region12: #{tpu_custom_call.1} parent=5 // pred_fallthru
        _
      %p174 = scmp.lt.s32.totalorder %s17, 2
      // Predicated region
      $region25: #{tpu_custom_call.1} parent=5 // pred_check
        %p175 = pneg %p174
      $region26: #{tpu_custom_call.1} parent=5 // pred_check_branch
        %177 = sbr.rel (%p175) target = $region28
      $region27: #{tpu_custom_call.1} parent=5 // pred_region
        // Predicated region
        $region29: #{tpu_custom_call.1} parent=27 // pred_check
          %p178 = pneg %p37
        $region30: #{tpu_custom_call.1} parent=27 // pred_check_branch
          %180 = sbr.rel (%p178) target = $region32
        $region31: #{tpu_custom_call.1} parent=27 // pred_region
          %s181 = sand.u32 %s27, 1
          %s182 = scalar_lea.sflag [#allocation3], %s181
          %s183 = sand.u32 %s27, 1
          %s184 = smul.addr %s183, 8
          %s185 = scalar_lea.vmem [#allocation2], %s184
          %s187 = ssub.s32 128, 128
          %188 = vsyncadd %s182, %s187
          %s189 = smul.addr %s17, 128
          %s190 = scalar_lea.hbm %s0, %s189
          %s192 = sshll.u32 %s185, 4
          %s193 = int_to_ptr.vmem [resolvable:$true] %s192
          %195 = dma.hbm_to_vmem [thread:$0]  %s190, 128, %s193, %s182
        $region32: #{tpu_custom_call.1} parent=27 // pred_fallthru
          _
      $region28: #{tpu_custom_call.1} parent=5 // pred_fallthru
        _
      %p196 = scmp.le.s32.totalorder 1, %s17
      %p197 = scmp.lt.s32.totalorder %s17, 3
      %p198 = pnand %p196, %p197
      %p199 = pneg %p198
      // Predicated region
      $region33: #{tpu_custom_call.1} parent=5 // pred_check
        _
      $region34: #{tpu_custom_call.1} parent=5 // pred_check_branch
        %201 = sbr.rel (%p198) target = $region36
      $region35: #{tpu_custom_call.1} parent=5 // pred_region
        %s202 = ssub.s32 %s17, 1
        %s203 = sand.u32 %s30, 1
        %s204 = scalar_lea.sflag [#allocation3], %s203
        %s205 = sand.u32 %s30, 1
        %s206 = smul.addr %s205, 8
        %s207 = scalar_lea.vmem [#allocation2], %s206
        // Predicated region
        $region37: #{tpu_custom_call.1} parent=35 // pred_check
          %p208 = pneg %p43
        $region38: #{tpu_custom_call.1} parent=35 // pred_check_branch
          %210 = sbr.rel (%p208) target = $region40
        $region39: #{tpu_custom_call.1} parent=35 // pred_region
          %211 = dma.done %s204, 128
        $region40: #{tpu_custom_call.1} parent=35 // pred_fallthru
          _
        // Predicated region
        $region41: #{tpu_custom_call.1} parent=35 // pred_check
          %p212 = pneg %p64
        $region42: #{tpu_custom_call.1} parent=35 // pred_check_branch
          %214 = sbr.rel (%p212) target = $region44
        $region43: #{tpu_custom_call.1} parent=35 // pred_region
          %215 = dma.done [#allocation6], 8192
        $region44: #{tpu_custom_call.1} parent=35 // pred_fallthru
          _
        // Predicated region
        $region45: #{tpu_custom_call.1} parent=35 // pred_check
          %p216 = pneg %p85
        $region46: #{tpu_custom_call.1} parent=35 // pred_check_branch
          %218 = sbr.rel (%p216) target = $region48
        $region47: #{tpu_custom_call.1} parent=35 // pred_region
          %219 = dma.done [#allocation6], 128
        $region48: #{tpu_custom_call.1} parent=35 // pred_fallthru
          _
        %s220 = sand.u32 %s30, 1
        %s221 = scalar_lea.sflag [#allocation3], %s220
        %s222 = sand.u32 %s30, 1
        %s223 = smul.addr %s222, 8
        %s224 = scalar_lea.vmem [#allocation2], %s223
        %p225 = pneg %p43
        %p226 = pneg %p40
        %p227 = pneg %p64
        %p228 = pneg %p61
        %p229 = pneg %p85
        %p230 = pneg %p82
        %p231 = pneg %p106
        %p232 = pneg %p103
        %p233 = pneg %p132
        %p234 = pneg %p129
        %s235 = sand.u32 %s119, 1
        %s236 = scalar_lea.sflag [#allocation4], %s235
        %s237 = sand.u32 %s119, 1
        %s238 = smul.addr %s237, 64
        %s239 = scalar_lea.vmem [#allocation8], %s238
        %v241 = vld [vmem:[%s207] sm:$0xff]
        %v242 = vand.u32 2147483647, %v241
        %vm243 = vcmp.lt.f32.partialorder %v242, inf
        %v244 = vsel %vm243, %v241, 0.0
        %v245 = vpack.c.bf16 %v244, %v244
        %v246 = vunpack.c.l.bf16 %v245
        %v247 = vsub.f32 %v244, %v246
        %v248 = vpack.c.bf16 %v247, %v247
        %v249 = vunpack.c.l.bf16 %v248
        %v250 = vsub.f32 %v247, %v249
        %v251 = vpack.c.bf16 %v250, %v250
        %v252 = vld [vmem:[#allocation5] sm:$0xff]
        %v253 = vld [vmem:[#allocation5 + $0x8] sm:$0xff]
        %v254 = vld [vmem:[#allocation5 + $0x10] sm:$0xff]
        %v255 = vld [vmem:[#allocation5 + $0x18] sm:$0xff]
        %v256 = vld [vmem:[#allocation5 + $0x20] sm:$0xff]
        %v257 = vld [vmem:[#allocation5 + $0x28] sm:$0xff]
        %v258 = vld [vmem:[#allocation5 + $0x30] sm:$0xff]
        %v259 = vld [vmem:[#allocation5 + $0x38] sm:$0xff]
        %v260 = vld [vmem:[#allocation5 + $0x40] sm:$0xff]
        %v261 = vld [vmem:[#allocation5 + $0x48] sm:$0xff]
        %v262 = vld [vmem:[#allocation5 + $0x50] sm:$0xff]
        %v263 = vld [vmem:[#allocation5 + $0x58] sm:$0xff]
        %v264 = vld [vmem:[#allocation5 + $0x60] sm:$0xff]
        %v265 = vld [vmem:[#allocation5 + $0x68] sm:$0xff]
        %v266 = vld [vmem:[#allocation5 + $0x70] sm:$0xff]
        %v267 = vld [vmem:[#allocation5 + $0x78] sm:$0xff]
        %v268 = vld [vmem:[#allocation5 + $0x80] sm:$0xff]
        %v269 = vld [vmem:[#allocation5 + $0x88] sm:$0xff]
        %v270 = vld [vmem:[#allocation5 + $0x90] sm:$0xff]
        %v271 = vld [vmem:[#allocation5 + $0x98] sm:$0xff]
        %v272 = vld [vmem:[#allocation5 + $0xa0] sm:$0xff]
        %v273 = vld [vmem:[#allocation5 + $0xa8] sm:$0xff]
        %v274 = vld [vmem:[#allocation5 + $0xb0] sm:$0xff]
        %v275 = vld [vmem:[#allocation5 + $0xb8] sm:$0xff]
        %v276 = vld [vmem:[#allocation5 + $0xc0] sm:$0xff]
        %v277 = vld [vmem:[#allocation5 + $0xc8] sm:$0xff]
        %v278 = vld [vmem:[#allocation5 + $0xd0] sm:$0xff]
        %v279 = vld [vmem:[#allocation5 + $0xd8] sm:$0xff]
        %v280 = vld [vmem:[#allocation5 + $0xe0] sm:$0xff]
        %v281 = vld [vmem:[#allocation5 + $0xe8] sm:$0xff]
        %v282 = vld [vmem:[#allocation5 + $0xf0] sm:$0xff]
        %v283 = vld [vmem:[#allocation5 + $0xf8] sm:$0xff]
        %v284 = vld [vmem:[#allocation5 + $0x100] sm:$0xff]
        %v285 = vld [vmem:[#allocation5 + $0x108] sm:$0xff]
        %v286 = vld [vmem:[#allocation5 + $0x110] sm:$0xff]
        %v287 = vld [vmem:[#allocation5 + $0x118] sm:$0xff]
        %v288 = vld [vmem:[#allocation5 + $0x120] sm:$0xff]
        %v289 = vld [vmem:[#allocation5 + $0x128] sm:$0xff]
        %v290 = vld [vmem:[#allocation5 + $0x130] sm:$0xff]
        %v291 = vld [vmem:[#allocation5 + $0x138] sm:$0xff]
        %v292 = vld [vmem:[#allocation5 + $0x140] sm:$0xff]
        %v293 = vld [vmem:[#allocation5 + $0x148] sm:$0xff]
        %v294 = vld [vmem:[#allocation5 + $0x150] sm:$0xff]
        %v295 = vld [vmem:[#allocation5 + $0x158] sm:$0xff]
        %v296 = vld [vmem:[#allocation5 + $0x160] sm:$0xff]
        %v297 = vld [vmem:[#allocation5 + $0x168] sm:$0xff]
        %v298 = vld [vmem:[#allocation5 + $0x170] sm:$0xff]
        %v299 = vld [vmem:[#allocation5 + $0x178] sm:$0xff]
        %v300 = vld [vmem:[#allocation5 + $0x180] sm:$0xff]
        %v301 = vld [vmem:[#allocation5 + $0x188] sm:$0xff]
        %v302 = vld [vmem:[#allocation5 + $0x190] sm:$0xff]
        %v303 = vld [vmem:[#allocation5 + $0x198] sm:$0xff]
        %v304 = vld [vmem:[#allocation5 + $0x1a0] sm:$0xff]
        %v305 = vld [vmem:[#allocation5 + $0x1a8] sm:$0xff]
        %v306 = vld [vmem:[#allocation5 + $0x1b0] sm:$0xff]
        %v307 = vld [vmem:[#allocation5 + $0x1b8] sm:$0xff]
        %v308 = vld [vmem:[#allocation5 + $0x1c0] sm:$0xff]
        %v309 = vld [vmem:[#allocation5 + $0x1c8] sm:$0xff]
        %v310 = vld [vmem:[#allocation5 + $0x1d0] sm:$0xff]
        %v311 = vld [vmem:[#allocation5 + $0x1d8] sm:$0xff]
        %v312 = vld [vmem:[#allocation5 + $0x1e0] sm:$0xff]
        %v313 = vld [vmem:[#allocation5 + $0x1e8] sm:$0xff]
        %v314 = vld [vmem:[#allocation5 + $0x1f0] sm:$0xff]
        %v315 = vld [vmem:[#allocation5 + $0x1f8] sm:$0xff]
        %v380 = vunpack.c.l.b16 %v252
        %v381 = vunpack.c.h.b16 %v252
        %v382 = vunpack.c.l.b16 %v253
        %v383 = vunpack.c.h.b16 %v253
        %v384 = vunpack.c.l.b16 %v254
        %v385 = vunpack.c.h.b16 %v254
        %v386 = vunpack.c.l.b16 %v255
        %v387 = vunpack.c.h.b16 %v255
        %v388 = vunpack.c.l.b16 %v256
        %v389 = vunpack.c.h.b16 %v256
        %v390 = vunpack.c.l.b16 %v257
        %v391 = vunpack.c.h.b16 %v257
        %v392 = vunpack.c.l.b16 %v258
        %v393 = vunpack.c.h.b16 %v258
        %v394 = vunpack.c.l.b16 %v259
        %v395 = vunpack.c.h.b16 %v259
        %v396 = vunpack.c.l.b16 %v260
        %v397 = vunpack.c.h.b16 %v260
        %v398 = vunpack.c.l.b16 %v261
        %v399 = vunpack.c.h.b16 %v261
        %v400 = vunpack.c.l.b16 %v262
        %v401 = vunpack.c.h.b16 %v262
        %v402 = vunpack.c.l.b16 %v263
        %v403 = vunpack.c.h.b16 %v263
        %v404 = vunpack.c.l.b16 %v264
        %v405 = vunpack.c.h.b16 %v264
        %v406 = vunpack.c.l.b16 %v265
        %v407 = vunpack.c.h.b16 %v265
        %v408 = vunpack.c.l.b16 %v266
        %v409 = vunpack.c.h.b16 %v266
        %v410 = vunpack.c.l.b16 %v267
        %v411 = vunpack.c.h.b16 %v267
        %v412 = vunpack.c.l.b16 %v268
        %v413 = vunpack.c.h.b16 %v268
        %v414 = vunpack.c.l.b16 %v269
        %v415 = vunpack.c.h.b16 %v269
        %v416 = vunpack.c.l.b16 %v270
        %v417 = vunpack.c.h.b16 %v270
        %v418 = vunpack.c.l.b16 %v271
        %v419 = vunpack.c.h.b16 %v271
        %v420 = vunpack.c.l.b16 %v272
        %v421 = vunpack.c.h.b16 %v272
        %v422 = vunpack.c.l.b16 %v273
        %v423 = vunpack.c.h.b16 %v273
        %v424 = vunpack.c.l.b16 %v274
        %v425 = vunpack.c.h.b16 %v274
        %v426 = vunpack.c.l.b16 %v275
        %v427 = vunpack.c.h.b16 %v275
        %v428 = vunpack.c.l.b16 %v276
        %v429 = vunpack.c.h.b16 %v276
        %v430 = vunpack.c.l.b16 %v277
        %v431 = vunpack.c.h.b16 %v277
        %v432 = vunpack.c.l.b16 %v278
        %v433 = vunpack.c.h.b16 %v278
        %v434 = vunpack.c.l.b16 %v279
        %v435 = vunpack.c.h.b16 %v279
        %v436 = vunpack.c.l.b16 %v280
        %v437 = vunpack.c.h.b16 %v280
        %v438 = vunpack.c.l.b16 %v281
        %v439 = vunpack.c.h.b16 %v281
        %v440 = vunpack.c.l.b16 %v282
        %v441 = vunpack.c.h.b16 %v282
        %v442 = vunpack.c.l.b16 %v283
        %v443 = vunpack.c.h.b16 %v283
        %v444 = vunpack.c.l.b16 %v284
        %v445 = vunpack.c.h.b16 %v284
        %v446 = vunpack.c.l.b16 %v285
        %v447 = vunpack.c.h.b16 %v285
        %v448 = vunpack.c.l.b16 %v286
        %v449 = vunpack.c.h.b16 %v286
        %v450 = vunpack.c.l.b16 %v287
        %v451 = vunpack.c.h.b16 %v287
        %v452 = vunpack.c.l.b16 %v288
        %v453 = vunpack.c.h.b16 %v288
        %v454 = vunpack.c.l.b16 %v289
        %v455 = vunpack.c.h.b16 %v289
        %v456 = vunpack.c.l.b16 %v290
        %v457 = vunpack.c.h.b16 %v290
        %v458 = vunpack.c.l.b16 %v291
        %v459 = vunpack.c.h.b16 %v291
        %v460 = vunpack.c.l.b16 %v292
        %v461 = vunpack.c.h.b16 %v292
        %v462 = vunpack.c.l.b16 %v293
        %v463 = vunpack.c.h.b16 %v293
        %v464 = vunpack.c.l.b16 %v294
        %v465 = vunpack.c.h.b16 %v294
        %v466 = vunpack.c.l.b16 %v295
        %v467 = vunpack.c.h.b16 %v295
        %v468 = vunpack.c.l.b16 %v296
        %v469 = vunpack.c.h.b16 %v296
        %v470 = vunpack.c.l.b16 %v297
        %v471 = vunpack.c.h.b16 %v297
        %v472 = vunpack.c.l.b16 %v298
        %v473 = vunpack.c.h.b16 %v298
        %v474 = vunpack.c.l.b16 %v299
        %v475 = vunpack.c.h.b16 %v299
        %v476 = vunpack.c.l.b16 %v300
        %v477 = vunpack.c.h.b16 %v300
        %v478 = vunpack.c.l.b16 %v301
        %v479 = vunpack.c.h.b16 %v301
        %v480 = vunpack.c.l.b16 %v302
        %v481 = vunpack.c.h.b16 %v302
        %v482 = vunpack.c.l.b16 %v303
        %v483 = vunpack.c.h.b16 %v303
        %v484 = vunpack.c.l.b16 %v304
        %v485 = vunpack.c.h.b16 %v304
        %v486 = vunpack.c.l.b16 %v305
        %v487 = vunpack.c.h.b16 %v305
        %v488 = vunpack.c.l.b16 %v306
        %v489 = vunpack.c.h.b16 %v306
        %v490 = vunpack.c.l.b16 %v307
        %v491 = vunpack.c.h.b16 %v307
        %v492 = vunpack.c.l.b16 %v308
        %v493 = vunpack.c.h.b16 %v308
        %v494 = vunpack.c.l.b16 %v309
        %v495 = vunpack.c.h.b16 %v309
        %v496 = vunpack.c.l.b16 %v310
        %v497 = vunpack.c.h.b16 %v310
        %v498 = vunpack.c.l.b16 %v311
        %v499 = vunpack.c.h.b16 %v311
        %v500 = vunpack.c.l.b16 %v312
        %v501 = vunpack.c.h.b16 %v312
        %v502 = vunpack.c.l.b16 %v313
        %v503 = vunpack.c.h.b16 %v313
        %v504 = vunpack.c.l.b16 %v314
        %v505 = vunpack.c.h.b16 %v314
        %v506 = vunpack.c.l.b16 %v315
        %v507 = vunpack.c.h.b16 %v315
        %v508 = vpack.c.b16 %v388, %v380
        %v509 = vpack.c.b16 %v389, %v381
        %v510 = vpack.c.b16 %v390, %v382
        %v511 = vpack.c.b16 %v391, %v383
        %v512 = vpack.c.b16 %v392, %v384
        %v513 = vpack.c.b16 %v393, %v385
        %v514 = vpack.c.b16 %v394, %v386
        %v515 = vpack.c.b16 %v395, %v387
        %v516 = vpack.c.b16 %v404, %v396
        %v517 = vpack.c.b16 %v405, %v397
        %v518 = vpack.c.b16 %v406, %v398
        %v519 = vpack.c.b16 %v407, %v399
        %v520 = vpack.c.b16 %v408, %v400
        %v521 = vpack.c.b16 %v409, %v401
        %v522 = vpack.c.b16 %v410, %v402
        %v523 = vpack.c.b16 %v411, %v403
        %v524 = vpack.c.b16 %v420, %v412
        %v525 = vpack.c.b16 %v421, %v413
        %v526 = vpack.c.b16 %v422, %v414
        %v527 = vpack.c.b16 %v423, %v415
        %v528 = vpack.c.b16 %v424, %v416
        %v529 = vpack.c.b16 %v425, %v417
        %v530 = vpack.c.b16 %v426, %v418
        %v531 = vpack.c.b16 %v427, %v419
        %v532 = vpack.c.b16 %v436, %v428
        %v533 = vpack.c.b16 %v437, %v429
        %v534 = vpack.c.b16 %v438, %v430
        %v535 = vpack.c.b16 %v439, %v431
        %v536 = vpack.c.b16 %v440, %v432
        %v537 = vpack.c.b16 %v441, %v433
        %v538 = vpack.c.b16 %v442, %v434
        %v539 = vpack.c.b16 %v443, %v435
        %v540 = vpack.c.b16 %v452, %v444
        %v541 = vpack.c.b16 %v453, %v445
        %v542 = vpack.c.b16 %v454, %v446
        %v543 = vpack.c.b16 %v455, %v447
        %v544 = vpack.c.b16 %v456, %v448
        %v545 = vpack.c.b16 %v457, %v449
        %v546 = vpack.c.b16 %v458, %v450
        %v547 = vpack.c.b16 %v459, %v451
        %v548 = vpack.c.b16 %v468, %v460
        %v549 = vpack.c.b16 %v469, %v461
        %v550 = vpack.c.b16 %v470, %v462
        %v551 = vpack.c.b16 %v471, %v463
        %v552 = vpack.c.b16 %v472, %v464
        %v553 = vpack.c.b16 %v473, %v465
        %v554 = vpack.c.b16 %v474, %v466
        %v555 = vpack.c.b16 %v475, %v467
        %v556 = vpack.c.b16 %v484, %v476
        %v557 = vpack.c.b16 %v485, %v477
        %v558 = vpack.c.b16 %v486, %v478
        %v559 = vpack.c.b16 %v487, %v479
        %v560 = vpack.c.b16 %v488, %v480
        %v561 = vpack.c.b16 %v489, %v481
        %v562 = vpack.c.b16 %v490, %v482
        %v563 = vpack.c.b16 %v491, %v483
        %v564 = vpack.c.b16 %v500, %v492
        %v565 = vpack.c.b16 %v501, %v493
        %v566 = vpack.c.b16 %v502, %v494
        %v567 = vpack.c.b16 %v503, %v495
        %v568 = vpack.c.b16 %v504, %v496
        %v569 = vpack.c.b16 %v505, %v497
        %v570 = vpack.c.b16 %v506, %v498
        %v571 = vpack.c.b16 %v507, %v499
        %636 = vmatprep.subr.bf16.mxu0 %v509
        %637 = vmatpush1.bf16.msra.mxu0 %v508
        %638 = vmatprep.subr.bf16.mxu0 %v517
        %639 = vmatpush1.bf16.msra.mxu0 %v516
        %640 = vmatprep.subr.bf16.mxu0 %v525
        %641 = vmatpush1.bf16.msra.mxu0 %v524
        %642 = vmatprep.subr.bf16.mxu0 %v533
        %643 = vmatpush1.bf16.msra.mxu0 %v532
        %644 = vmatprep.subr.bf16.mxu0 %v541
        %645 = vmatpush1.bf16.msra.mxu0 %v540
        %646 = vmatprep.subr.bf16.mxu0 %v549
        %647 = vmatpush1.bf16.msra.mxu0 %v548
        %648 = vmatprep.subr.bf16.mxu0 %v557
        %649 = vmatpush1.bf16.msra.mxu0 %v556
        %650 = vmatprep.subr.bf16.mxu0 %v565
        %651 = vmatpush1.bf16.msra.mxu0 %v564
        %652 = vmatprep.subr.bf16.mxu0 0
        %653 = vmatpush1.bf16.msra.mxu0 0
        %654 = vmatprep.subr.bf16.mxu0 0
        %655 = vmatpush1.bf16.msra.mxu0 0
        %656 = vmatprep.subr.bf16.mxu0 0
        %657 = vmatpush1.bf16.msra.mxu0 0
        %658 = vmatprep.subr.bf16.mxu0 0
        %659 = vmatpush1.bf16.msra.mxu0 0
        %660 = vmatprep.subr.bf16.mxu0 0
        %661 = vmatpush1.bf16.msra.mxu0 0
        %662 = vmatprep.subr.bf16.mxu0 0
        %663 = vmatpush1.bf16.msra.mxu0 0
        %664 = vmatprep.subr.bf16.mxu0 0
        %665 = vmatpush1.bf16.msra.mxu0 0
        %666 = vmatprep.subr.bf16.mxu0 0
        %667 = vmatpush1.bf16.msra.mxu0 0
        %668 = vmatprep.mubr.bf16.mxu0 0
        %669 = vmatmul.mubr.bf16.gmra.mrb[0].mxu0 %v248
        %v670 = vpop.f32.mrb[0].mxu0
        %v671 = vadd.f32 0.0, %v670
        %v672 = vpop.f32.mrb[0].mxu0
        %v673 = vadd.f32 0.0, %v672
        %v674 = vpop.f32.mrb[0].mxu0
        %v675 = vpop.f32.mrb[0].mxu0
        %676 = vdwg.mxu0
        %677 = vmatprep.subr.bf16.mxu0 %v511
        %678 = vmatpush1.bf16.msra.mxu0 %v510
        %679 = vmatprep.subr.bf16.mxu0 %v519
        %680 = vmatpush1.bf16.msra.mxu0 %v518
        %681 = vmatprep.subr.bf16.mxu0 %v527
        %682 = vmatpush1.bf16.msra.mxu0 %v526
        %683 = vmatprep.subr.bf16.mxu0 %v535
        %684 = vmatpush1.bf16.msra.mxu0 %v534
        %685 = vmatprep.subr.bf16.mxu0 %v543
        %686 = vmatpush1.bf16.msra.mxu0 %v542
        %687 = vmatprep.subr.bf16.mxu0 %v551
        %688 = vmatpush1.bf16.msra.mxu0 %v550
        %689 = vmatprep.subr.bf16.mxu0 %v559
        %690 = vmatpush1.bf16.msra.mxu0 %v558
        %691 = vmatprep.subr.bf16.mxu0 %v567
        %692 = vmatpush1.bf16.msra.mxu0 %v566
        %693 = vmatprep.subr.bf16.mxu0 0
        %694 = vmatpush1.bf16.msra.mxu0 0
        %695 = vmatprep.subr.bf16.mxu0 0
        %696 = vmatpush1.bf16.msra.mxu0 0
        %697 = vmatprep.subr.bf16.mxu0 0
        %698 = vmatpush1.bf16.msra.mxu0 0
        %699 = vmatprep.subr.bf16.mxu0 0
        %700 = vmatpush1.bf16.msra.mxu0 0
        %701 = vmatprep.subr.bf16.mxu0 0
        %702 = vmatpush1.bf16.msra.mxu0 0
        %703 = vmatprep.subr.bf16.mxu0 0
        %704 = vmatpush1.bf16.msra.mxu0 0
        %705 = vmatprep.subr.bf16.mxu0 0
        %706 = vmatpush1.bf16.msra.mxu0 0
        %707 = vmatprep.subr.bf16.mxu0 0
        %708 = vmatpush1.bf16.msra.mxu0 0
        %709 = vmatprep.mubr.bf16.mxu0 0
        %710 = vmatmul.mubr.bf16.gmra.mrb[0].mxu0 %v248
        %v711 = vpop.f32.mrb[0].mxu0
        %v712 = vadd.f32 0.0, %v711
        %v713 = vpop.f32.mrb[0].mxu0
        %v714 = vadd.f32 0.0, %v713
        %v715 = vpop.f32.mrb[0].mxu0
        %v716 = vpop.f32.mrb[0].mxu0
        %717 = vdwg.mxu0
        %718 = vmatprep.subr.bf16.mxu0 %v513
        %719 = vmatpush1.bf16.msra.mxu0 %v512
        %720 = vmatprep.subr.bf16.mxu0 %v521
        %721 = vmatpush1.bf16.msra.mxu0 %v520
        %722 = vmatprep.subr.bf16.mxu0 %v529
        %723 = vmatpush1.bf16.msra.mxu0 %v528
        %724 = vmatprep.subr.bf16.mxu0 %v537
        %725 = vmatpush1.bf16.msra.mxu0 %v536
        %726 = vmatprep.subr.bf16.mxu0 %v545
        %727 = vmatpush1.bf16.msra.mxu0 %v544
        %728 = vmatprep.subr.bf16.mxu0 %v553
        %729 = vmatpush1.bf16.msra.mxu0 %v552
        %730 = vmatprep.subr.bf16.mxu0 %v561
        %731 = vmatpush1.bf16.msra.mxu0 %v560
        %732 = vmatprep.subr.bf16.mxu0 %v569
        %733 = vmatpush1.bf16.msra.mxu0 %v568
        %734 = vmatprep.subr.bf16.mxu0 0
        %735 = vmatpush1.bf16.msra.mxu0 0
        %736 = vmatprep.subr.bf16.mxu0 0
        %737 = vmatpush1.bf16.msra.mxu0 0
        %738 = vmatprep.subr.bf16.mxu0 0
        %739 = vmatpush1.bf16.msra.mxu0 0
        %740 = vmatprep.subr.bf16.mxu0 0
        %741 = vmatpush1.bf16.msra.mxu0 0
        %742 = vmatprep.subr.bf16.mxu0 0
        %743 = vmatpush1.bf16.msra.mxu0 0
        %744 = vmatprep.subr.bf16.mxu0 0
        %745 = vmatpush1.bf16.msra.mxu0 0
        %746 = vmatprep.subr.bf16.mxu0 0
        %747 = vmatpush1.bf16.msra.mxu0 0
        %748 = vmatprep.subr.bf16.mxu0 0
        %749 = vmatpush1.bf16.msra.mxu0 0
        %750 = vmatprep.mubr.bf16.mxu0 0
        %751 = vmatmul.mubr.bf16.gmra.mrb[0].mxu0 %v248
        %v752 = vpop.f32.mrb[0].mxu0
        %v753 = vadd.f32 0.0, %v752
        %v754 = vpop.f32.mrb[0].mxu0
        %v755 = vadd.f32 0.0, %v754
        %v756 = vpop.f32.mrb[0].mxu0
        %v757 = vpop.f32.mrb[0].mxu0
        %758 = vdwg.mxu0
        %759 = vmatprep.subr.bf16.mxu0 %v515
        %760 = vmatpush1.bf16.msra.mxu0 %v514
        %761 = vmatprep.subr.bf16.mxu0 %v523
        %762 = vmatpush1.bf16.msra.mxu0 %v522
        %763 = vmatprep.subr.bf16.mxu0 %v531
        %764 = vmatpush1.bf16.msra.mxu0 %v530
        %765 = vmatprep.subr.bf16.mxu0 %v539
        %766 = vmatpush1.bf16.msra.mxu0 %v538
        %767 = vmatprep.subr.bf16.mxu0 %v547
        %768 = vmatpush1.bf16.msra.mxu0 %v546
        %769 = vmatprep.subr.bf16.mxu0 %v555
        %770 = vmatpush1.bf16.msra.mxu0 %v554
        %771 = vmatprep.subr.bf16.mxu0 %v563
        %772 = vmatpush1.bf16.msra.mxu0 %v562
        %773 = vmatprep.subr.bf16.mxu0 %v571
        %774 = vmatpush1.bf16.msra.mxu0 %v570
        %775 = vmatprep.subr.bf16.mxu0 0
        %776 = vmatpush1.bf16.msra.mxu0 0
        %777 = vmatprep.subr.bf16.mxu0 0
        %778 = vmatpush1.bf16.msra.mxu0 0
        %779 = vmatprep.subr.bf16.mxu0 0
        %780 = vmatpush1.bf16.msra.mxu0 0
        %781 = vmatprep.subr.bf16.mxu0 0
        %782 = vmatpush1.bf16.msra.mxu0 0
        %783 = vmatprep.subr.bf16.mxu0 0
        %784 = vmatpush1.bf16.msra.mxu0 0
        %785 = vmatprep.subr.bf16.mxu0 0
        %786 = vmatpush1.bf16.msra.mxu0 0
        %787 = vmatprep.subr.bf16.mxu0 0
        %788 = vmatpush1.bf16.msra.mxu0 0
        %789 = vmatprep.subr.bf16.mxu0 0
        %790 = vmatpush1.bf16.msra.mxu0 0
        %791 = vmatprep.mubr.bf16.mxu0 0
        %792 = vmatmul.mubr.bf16.gmra.mrb[0].mxu0 %v248
        %v793 = vpop.f32.mrb[0].mxu0
        %v794 = vadd.f32 0.0, %v793
        %v795 = vpop.f32.mrb[0].mxu0
        %v796 = vadd.f32 0.0, %v795
        %v797 = vpop.f32.mrb[0].mxu0
        %v798 = vpop.f32.mrb[0].mxu0
        %799 = vdwg.mxu0
        %800 = vmatprep.subr.bf16.mxu0 %v509
        %801 = vmatpush1.bf16.msra.mxu0 %v508
        %802 = vmatprep.subr.bf16.mxu0 %v517
        %803 = vmatpush1.bf16.msra.mxu0 %v516
        %804 = vmatprep.subr.bf16.mxu0 %v525
        %805 = vmatpush1.bf16.msra.mxu0 %v524
        %806 = vmatprep.subr.bf16.mxu0 %v533
        %807 = vmatpush1.bf16.msra.mxu0 %v532
        %808 = vmatprep.subr.bf16.mxu0 %v541
        %809 = vmatpush1.bf16.msra.mxu0 %v540
        %810 = vmatprep.subr.bf16.mxu0 %v549
        %811 = vmatpush1.bf16.msra.mxu0 %v548
        %812 = vmatprep.subr.bf16.mxu0 %v557
        %813 = vmatpush1.bf16.msra.mxu0 %v556
        %814 = vmatprep.subr.bf16.mxu0 %v565
        %815 = vmatpush1.bf16.msra.mxu0 %v564
        %816 = vmatprep.subr.bf16.mxu0 0
        %817 = vmatpush1.bf16.msra.mxu0 0
        %818 = vmatprep.subr.bf16.mxu0 0
        %819 = vmatpush1.bf16.msra.mxu0 0
        %820 = vmatprep.subr.bf16.mxu0 0
        %821 = vmatpush1.bf16.msra.mxu0 0
        %822 = vmatprep.subr.bf16.mxu0 0
        %823 = vmatpush1.bf16.msra.mxu0 0
        %824 = vmatprep.subr.bf16.mxu0 0
        %825 = vmatpush1.bf16.msra.mxu0 0
        %826 = vmatprep.subr.bf16.mxu0 0
        %827 = vmatpush1.bf16.msra.mxu0 0
        %828 = vmatprep.subr.bf16.mxu0 0
        %829 = vmatpush1.bf16.msra.mxu0 0
        %830 = vmatprep.subr.bf16.mxu0 0
        %831 = vmatpush1.bf16.msra.mxu0 0
        %832 = vmatprep.mubr.bf16.mxu0 0
        %833 = vmatmul.mubr.bf16.gmra.mrb[0].mxu0 %v245
        %v834 = vpop.f32.mrb[0].mxu0
        %v835 = vadd.f32 %v671, %v834
        %v836 = vpop.f32.mrb[0].mxu0
        %v837 = vadd.f32 %v673, %v836
        %v838 = vpop.f32.mrb[0].mxu0
        %v839 = vpop.f32.mrb[0].mxu0
        %840 = vdwg.mxu0
        %841 = vmatprep.subr.bf16.mxu0 %v511
        %842 = vmatpush1.bf16.msra.mxu0 %v510
        %843 = vmatprep.subr.bf16.mxu0 %v519
        %844 = vmatpush1.bf16.msra.mxu0 %v518
        %845 = vmatprep.subr.bf16.mxu0 %v527
        %846 = vmatpush1.bf16.msra.mxu0 %v526
        %847 = vmatprep.subr.bf16.mxu0 %v535
        %848 = vmatpush1.bf16.msra.mxu0 %v534
        %849 = vmatprep.subr.bf16.mxu0 %v543
        %850 = vmatpush1.bf16.msra.mxu0 %v542
        %851 = vmatprep.subr.bf16.mxu0 %v551
        %852 = vmatpush1.bf16.msra.mxu0 %v550
        %853 = vmatprep.subr.bf16.mxu0 %v559
        %854 = vmatpush1.bf16.msra.mxu0 %v558
        %855 = vmatprep.subr.bf16.mxu0 %v567
        %856 = vmatpush1.bf16.msra.mxu0 %v566
        %857 = vmatprep.subr.bf16.mxu0 0
        %858 = vmatpush1.bf16.msra.mxu0 0
        %859 = vmatprep.subr.bf16.mxu0 0
        %860 = vmatpush1.bf16.msra.mxu0 0
        %861 = vmatprep.subr.bf16.mxu0 0
        %862 = vmatpush1.bf16.msra.mxu0 0
        %863 = vmatprep.subr.bf16.mxu0 0
        %864 = vmatpush1.bf16.msra.mxu0 0
        %865 = vmatprep.subr.bf16.mxu0 0
        %866 = vmatpush1.bf16.msra.mxu0 0
        %867 = vmatprep.subr.bf16.mxu0 0
        %868 = vmatpush1.bf16.msra.mxu0 0
        %869 = vmatprep.subr.bf16.mxu0 0
        %870 = vmatpush1.bf16.msra.mxu0 0
        %871 = vmatprep.subr.bf16.mxu0 0
        %872 = vmatpush1.bf16.msra.mxu0 0
        %873 = vmatprep.mubr.bf16.mxu0 0
        %874 = vmatmul.mubr.bf16.gmra.mrb[0].mxu0 %v245
        %v875 = vpop.f32.mrb[0].mxu0
        %v876 = vadd.f32 %v712, %v875
        %v877 = vpop.f32.mrb[0].mxu0
        %v878 = vadd.f32 %v714, %v877
        %v879 = vpop.f32.mrb[0].mxu0
        %v880 = vpop.f32.mrb[0].mxu0
        %881 = vdwg.mxu0
        %882 = vmatprep.subr.bf16.mxu0 %v513
        %883 = vmatpush1.bf16.msra.mxu0 %v512
        %884 = vmatprep.subr.bf16.mxu0 %v521
        %885 = vmatpush1.bf16.msra.mxu0 %v520
        %886 = vmatprep.subr.bf16.mxu0 %v529
        %887 = vmatpush1.bf16.msra.mxu0 %v528
        %888 = vmatprep.subr.bf16.mxu0 %v537
        %889 = vmatpush1.bf16.msra.mxu0 %v536
        %890 = vmatprep.subr.bf16.mxu0 %v545
        %891 = vmatpush1.bf16.msra.mxu0 %v544
        %892 = vmatprep.subr.bf16.mxu0 %v553
        %893 = vmatpush1.bf16.msra.mxu0 %v552
        %894 = vmatprep.subr.bf16.mxu0 %v561
        %895 = vmatpush1.bf16.msra.mxu0 %v560
        %896 = vmatprep.subr.bf16.mxu0 %v569
        %897 = vmatpush1.bf16.msra.mxu0 %v568
        %898 = vmatprep.subr.bf16.mxu0 0
        %899 = vmatpush1.bf16.msra.mxu0 0
        %900 = vmatprep.subr.bf16.mxu0 0
        %901 = vmatpush1.bf16.msra.mxu0 0
        %902 = vmatprep.subr.bf16.mxu0 0
        %903 = vmatpush1.bf16.msra.mxu0 0
        %904 = vmatprep.subr.bf16.mxu0 0
        %905 = vmatpush1.bf16.msra.mxu0 0
        %906 = vmatprep.subr.bf16.mxu0 0
        %907 = vmatpush1.bf16.msra.mxu0 0
        %908 = vmatprep.subr.bf16.mxu0 0
        %909 = vmatpush1.bf16.msra.mxu0 0
        %910 = vmatprep.subr.bf16.mxu0 0
        %911 = vmatpush1.bf16.msra.mxu0 0
        %912 = vmatprep.subr.bf16.mxu0 0
        %913 = vmatpush1.bf16.msra.mxu0 0
        %914 = vmatprep.mubr.bf16.mxu0 0
        %915 = vmatmul.mubr.bf16.gmra.mrb[0].mxu0 %v245
        %v916 = vpop.f32.mrb[0].mxu0
        %v917 = vadd.f32 %v753, %v916
        %v918 = vpop.f32.mrb[0].mxu0
        %v919 = vadd.f32 %v755, %v918
        %v920 = vpop.f32.mrb[0].mxu0
        %v921 = vpop.f32.mrb[0].mxu0
        %922 = vdwg.mxu0
        %923 = vmatprep.subr.bf16.mxu0 %v515
        %924 = vmatpush1.bf16.msra.mxu0 %v514
        %925 = vmatprep.subr.bf16.mxu0 %v523
        %926 = vmatpush1.bf16.msra.mxu0 %v522
        %927 = vmatprep.subr.bf16.mxu0 %v531
        %928 = vmatpush1.bf16.msra.mxu0 %v530
        %929 = vmatprep.subr.bf16.mxu0 %v539
        %930 = vmatpush1.bf16.msra.mxu0 %v538
        %931 = vmatprep.subr.bf16.mxu0 %v547
        %932 = vmatpush1.bf16.msra.mxu0 %v546
        %933 = vmatprep.subr.bf16.mxu0 %v555
        %934 = vmatpush1.bf16.msra.mxu0 %v554
        %935 = vmatprep.subr.bf16.mxu0 %v563
        %936 = vmatpush1.bf16.msra.mxu0 %v562
        %937 = vmatprep.subr.bf16.mxu0 %v571
        %938 = vmatpush1.bf16.msra.mxu0 %v570
        %939 = vmatprep.subr.bf16.mxu0 0
        %940 = vmatpush1.bf16.msra.mxu0 0
        %941 = vmatprep.subr.bf16.mxu0 0
        %942 = vmatpush1.bf16.msra.mxu0 0
        %943 = vmatprep.subr.bf16.mxu0 0
        %944 = vmatpush1.bf16.msra.mxu0 0
        %945 = vmatprep.subr.bf16.mxu0 0
        %946 = vmatpush1.bf16.msra.mxu0 0
        %947 = vmatprep.subr.bf16.mxu0 0
        %948 = vmatpush1.bf16.msra.mxu0 0
        %949 = vmatprep.subr.bf16.mxu0 0
        %950 = vmatpush1.bf16.msra.mxu0 0
        %951 = vmatprep.subr.bf16.mxu0 0
        %952 = vmatpush1.bf16.msra.mxu0 0
        %953 = vmatprep.subr.bf16.mxu0 0
        %954 = vmatpush1.bf16.msra.mxu0 0
        %955 = vmatprep.mubr.bf16.mxu0 0
        %956 = vmatmul.mubr.bf16.gmra.mrb[0].mxu0 %v245
        %v957 = vpop.f32.mrb[0].mxu0
        %v958 = vadd.f32 %v794, %v957
        %v959 = vpop.f32.mrb[0].mxu0
        %v960 = vadd.f32 %v796, %v959
        %v961 = vpop.f32.mrb[0].mxu0
        %v962 = vpop.f32.mrb[0].mxu0
        %963 = vdwg.mxu0
        %964 = vmatprep.subr.bf16.mxu0 %v509
        %965 = vmatpush1.bf16.msra.mxu0 %v508
        %966 = vmatprep.subr.bf16.mxu0 %v517
        %967 = vmatpush1.bf16.msra.mxu0 %v516
        %968 = vmatprep.subr.bf16.mxu0 %v525
        %969 = vmatpush1.bf16.msra.mxu0 %v524
        %970 = vmatprep.subr.bf16.mxu0 %v533
        %971 = vmatpush1.bf16.msra.mxu0 %v532
        %972 = vmatprep.subr.bf16.mxu0 %v541
        %973 = vmatpush1.bf16.msra.mxu0 %v540
        %974 = vmatprep.subr.bf16.mxu0 %v549
        %975 = vmatpush1.bf16.msra.mxu0 %v548
        %976 = vmatprep.subr.bf16.mxu0 %v557
        %977 = vmatpush1.bf16.msra.mxu0 %v556
        %978 = vmatprep.subr.bf16.mxu0 %v565
        %979 = vmatpush1.bf16.msra.mxu0 %v564
        %980 = vmatprep.subr.bf16.mxu0 0
        %981 = vmatpush1.bf16.msra.mxu0 0
        %982 = vmatprep.subr.bf16.mxu0 0
        %983 = vmatpush1.bf16.msra.mxu0 0
        %984 = vmatprep.subr.bf16.mxu0 0
        %985 = vmatpush1.bf16.msra.mxu0 0
        %986 = vmatprep.subr.bf16.mxu0 0
        %987 = vmatpush1.bf16.msra.mxu0 0
        %988 = vmatprep.subr.bf16.mxu0 0
        %989 = vmatpush1.bf16.msra.mxu0 0
        %990 = vmatprep.subr.bf16.mxu0 0
        %991 = vmatpush1.bf16.msra.mxu0 0
        %992 = vmatprep.subr.bf16.mxu0 0
        %993 = vmatpush1.bf16.msra.mxu0 0
        %994 = vmatprep.subr.bf16.mxu0 0
        %995 = vmatpush1.bf16.msra.mxu0 0
        %996 = vmatprep.mubr.bf16.mxu0 0
        %997 = vmatmul.mubr.bf16.gmra.mrb[0].mxu0 %v251
        %v998 = vpop.f32.mrb[0].mxu0
        %v999 = vadd.f32 0.0, %v998
        %v1000 = vpop.f32.mrb[0].mxu0
        %v1001 = vadd.f32 0.0, %v1000
        %v1002 = vpop.f32.mrb[0].mxu0
        %v1003 = vpop.f32.mrb[0].mxu0
        %1004 = vdwg.mxu0
        %1005 = vmatprep.subr.bf16.mxu0 %v511
        %1006 = vmatpush1.bf16.msra.mxu0 %v510
        %1007 = vmatprep.subr.bf16.mxu0 %v519
        %1008 = vmatpush1.bf16.msra.mxu0 %v518
        %1009 = vmatprep.subr.bf16.mxu0 %v527
        %1010 = vmatpush1.bf16.msra.mxu0 %v526
        %1011 = vmatprep.subr.bf16.mxu0 %v535
        %1012 = vmatpush1.bf16.msra.mxu0 %v534
        %1013 = vmatprep.subr.bf16.mxu0 %v543
        %1014 = vmatpush1.bf16.msra.mxu0 %v542
        %1015 = vmatprep.subr.bf16.mxu0 %v551
        %1016 = vmatpush1.bf16.msra.mxu0 %v550
        %1017 = vmatprep.subr.bf16.mxu0 %v559
        %1018 = vmatpush1.bf16.msra.mxu0 %v558
        %1019 = vmatprep.subr.bf16.mxu0 %v567
        %1020 = vmatpush1.bf16.msra.mxu0 %v566
        %1021 = vmatprep.subr.bf16.mxu0 0
        %1022 = vmatpush1.bf16.msra.mxu0 0
        %1023 = vmatprep.subr.bf16.mxu0 0
        %1024 = vmatpush1.bf16.msra.mxu0 0
        %1025 = vmatprep.subr.bf16.mxu0 0
        %1026 = vmatpush1.bf16.msra.mxu0 0
        %1027 = vmatprep.subr.bf16.mxu0 0
        %1028 = vmatpush1.bf16.msra.mxu0 0
        %1029 = vmatprep.subr.bf16.mxu0 0
        %1030 = vmatpush1.bf16.msra.mxu0 0
        %1031 = vmatprep.subr.bf16.mxu0 0
        %1032 = vmatpush1.bf16.msra.mxu0 0
        %1033 = vmatprep.subr.bf16.mxu0 0
        %1034 = vmatpush1.bf16.msra.mxu0 0
        %1035 = vmatprep.subr.bf16.mxu0 0
        %1036 = vmatpush1.bf16.msra.mxu0 0
        %1037 = vmatprep.mubr.bf16.mxu0 0
        %1038 = vmatmul.mubr.bf16.gmra.mrb[0].mxu0 %v251
        %v1039 = vpop.f32.mrb[0].mxu0
        %v1040 = vadd.f32 0.0, %v1039
        %v1041 = vpop.f32.mrb[0].mxu0
        %v1042 = vadd.f32 0.0, %v1041
        %v1043 = vpop.f32.mrb[0].mxu0
        %v1044 = vpop.f32.mrb[0].mxu0
        %1045 = vdwg.mxu0
        %1046 = vmatprep.subr.bf16.mxu0 %v513
        %1047 = vmatpush1.bf16.msra.mxu0 %v512
        %1048 = vmatprep.subr.bf16.mxu0 %v521
        %1049 = vmatpush1.bf16.msra.mxu0 %v520
        %1050 = vmatprep.subr.bf16.mxu0 %v529
        %1051 = vmatpush1.bf16.msra.mxu0 %v528
        %1052 = vmatprep.subr.bf16.mxu0 %v537
        %1053 = vmatpush1.bf16.msra.mxu0 %v536
        %1054 = vmatprep.subr.bf16.mxu0 %v545
        %1055 = vmatpush1.bf16.msra.mxu0 %v544
        %1056 = vmatprep.subr.bf16.mxu0 %v553
        %1057 = vmatpush1.bf16.msra.mxu0 %v552
        %1058 = vmatprep.subr.bf16.mxu0 %v561
        %1059 = vmatpush1.bf16.msra.mxu0 %v560
        %1060 = vmatprep.subr.bf16.mxu0 %v569
        %1061 = vmatpush1.bf16.msra.mxu0 %v568
        %1062 = vmatprep.subr.bf16.mxu0 0
        %1063 = vmatpush1.bf16.msra.mxu0 0
        %1064 = vmatprep.subr.bf16.mxu0 0
        %1065 = vmatpush1.bf16.msra.mxu0 0
        %1066 = vmatprep.subr.bf16.mxu0 0
        %1067 = vmatpush1.bf16.msra.mxu0 0
        %1068 = vmatprep.subr.bf16.mxu0 0
        %1069 = vmatpush1.bf16.msra.mxu0 0
        %1070 = vmatprep.subr.bf16.mxu0 0
        %1071 = vmatpush1.bf16.msra.mxu0 0
        %1072 = vmatprep.subr.bf16.mxu0 0
        %1073 = vmatpush1.bf16.msra.mxu0 0
        %1074 = vmatprep.subr.bf16.mxu0 0
        %1075 = vmatpush1.bf16.msra.mxu0 0
        %1076 = vmatprep.subr.bf16.mxu0 0
        %1077 = vmatpush1.bf16.msra.mxu0 0
        %1078 = vmatprep.mubr.bf16.mxu0 0
        %1079 = vmatmul.mubr.bf16.gmra.mrb[0].mxu0 %v251
        %v1080 = vpop.f32.mrb[0].mxu0
        %v1081 = vadd.f32 0.0, %v1080
        %v1082 = vpop.f32.mrb[0].mxu0
        %v1083 = vadd.f32 0.0, %v1082
        %v1084 = vpop.f32.mrb[0].mxu0
        %v1085 = vpop.f32.mrb[0].mxu0
        %1086 = vdwg.mxu0
        %1087 = vmatprep.subr.bf16.mxu0 %v515
        %1088 = vmatpush1.bf16.msra.mxu0 %v514
        %1089 = vmatprep.subr.bf16.mxu0 %v523
        %1090 = vmatpush1.bf16.msra.mxu0 %v522
        %1091 = vmatprep.subr.bf16.mxu0 %v531
        %1092 = vmatpush1.bf16.msra.mxu0 %v530
        %1093 = vmatprep.subr.bf16.mxu0 %v539
        %1094 = vmatpush1.bf16.msra.mxu0 %v538
        %1095 = vmatprep.subr.bf16.mxu0 %v547
        %1096 = vmatpush1.bf16.msra.mxu0 %v546
        %1097 = vmatprep.subr.bf16.mxu0 %v555
        %1098 = vmatpush1.bf16.msra.mxu0 %v554
        %1099 = vmatprep.subr.bf16.mxu0 %v563
        %1100 = vmatpush1.bf16.msra.mxu0 %v562
        %1101 = vmatprep.subr.bf16.mxu0 %v571
        %1102 = vmatpush1.bf16.msra.mxu0 %v570
        %1103 = vmatprep.subr.bf16.mxu0 0
        %1104 = vmatpush1.bf16.msra.mxu0 0
        %1105 = vmatprep.subr.bf16.mxu0 0
        %1106 = vmatpush1.bf16.msra.mxu0 0
        %1107 = vmatprep.subr.bf16.mxu0 0
        %1108 = vmatpush1.bf16.msra.mxu0 0
        %1109 = vmatprep.subr.bf16.mxu0 0
        %1110 = vmatpush1.bf16.msra.mxu0 0
        %1111 = vmatprep.subr.bf16.mxu0 0
        %1112 = vmatpush1.bf16.msra.mxu0 0
        %1113 = vmatprep.subr.bf16.mxu0 0
        %1114 = vmatpush1.bf16.msra.mxu0 0
        %1115 = vmatprep.subr.bf16.mxu0 0
        %1116 = vmatpush1.bf16.msra.mxu0 0
        %1117 = vmatprep.subr.bf16.mxu0 0
        %1118 = vmatpush1.bf16.msra.mxu0 0
        %1119 = vmatprep.mubr.bf16.mxu0 0
        %1120 = vmatmul.mubr.bf16.gmra.mrb[0].mxu0 %v251
        %v1121 = vpop.f32.mrb[0].mxu0
        %v1122 = vadd.f32 0.0, %v1121
        %v1123 = vpop.f32.mrb[0].mxu0
        %v1124 = vadd.f32 0.0, %v1123
        %v1125 = vpop.f32.mrb[0].mxu0
        %v1126 = vpop.f32.mrb[0].mxu0
        %1127 = vdwg.mxu0
        %v1128 = vadd.f32 %v835, %v999
        %v1129 = vadd.f32 %v837, %v1001
        %v1130 = vadd.f32 %v876, %v1040
        %v1131 = vadd.f32 %v878, %v1042
        %v1132 = vadd.f32 %v917, %v1081
        %v1133 = vadd.f32 %v919, %v1083
        %v1134 = vadd.f32 %v958, %v1122
        %v1135 = vadd.f32 %v960, %v1124
        %v1136 = vld [vmem:[#allocation7] sm:$0xff]
        %v1138 = vlaneseq
        %v1139 = vshrl.u32 %v1138, 7
        %v1140 = vsub.s32 0, %v1139
        %v1141 = vrot.slane %v1136, %v1140
        %v1142 = vlaneseq
        %v1143 = vshrl.u32 %v1142, 7
        %v1144 = vsub.s32 1, %v1143
        %v1145 = vrot.slane %v1136, %v1144
        %v1146 = vlaneseq
        %v1147 = vshrl.u32 %v1146, 7
        %v1148 = vsub.s32 2, %v1147
        %v1149 = vrot.slane %v1136, %v1148
        %v1150 = vlaneseq
        %v1151 = vshrl.u32 %v1150, 7
        %v1152 = vsub.s32 3, %v1151
        %v1153 = vrot.slane %v1136, %v1152
        %v1154 = vlaneseq
        %v1155 = vshrl.u32 %v1154, 7
        %v1156 = vsub.s32 4, %v1155
        %v1157 = vrot.slane %v1136, %v1156
        %v1158 = vlaneseq
        %v1159 = vshrl.u32 %v1158, 7
        %v1160 = vsub.s32 5, %v1159
        %v1161 = vrot.slane %v1136, %v1160
        %v1162 = vlaneseq
        %v1163 = vshrl.u32 %v1162, 7
        %v1164 = vsub.s32 6, %v1163
        %v1165 = vrot.slane %v1136, %v1164
        %v1166 = vlaneseq
        %v1167 = vshrl.u32 %v1166, 7
        %v1168 = vsub.s32 7, %v1167
        %v1169 = vrot.slane %v1136, %v1168
        %v1178 = vmul.f32 %v1128, %v1141
        %v1179 = vmul.f32 %v1129, %v1145
        %v1180 = vmul.f32 %v1130, %v1149
        %v1181 = vmul.f32 %v1131, %v1153
        %v1182 = vmul.f32 %v1132, %v1157
        %v1183 = vmul.f32 %v1133, %v1161
        %v1184 = vmul.f32 %v1134, %v1165
        %v1185 = vmul.f32 %v1135, %v1169
        %v1186 = vld [vmem:[%s3] sm:$0xff]
        %v1188 = vlaneseq
        %v1189 = vshrl.u32 %v1188, 7
        %v1190 = vsub.s32 0, %v1189
        %v1191 = vrot.slane %v1186, %v1190
        %v1192 = vlaneseq
        %v1193 = vshrl.u32 %v1192, 7
        %v1194 = vsub.s32 1, %v1193
        %v1195 = vrot.slane %v1186, %v1194
        %v1196 = vlaneseq
        %v1197 = vshrl.u32 %v1196, 7
        %v1198 = vsub.s32 2, %v1197
        %v1199 = vrot.slane %v1186, %v1198
        %v1200 = vlaneseq
        %v1201 = vshrl.u32 %v1200, 7
        %v1202 = vsub.s32 3, %v1201
        %v1203 = vrot.slane %v1186, %v1202
        %v1204 = vlaneseq
        %v1205 = vshrl.u32 %v1204, 7
        %v1206 = vsub.s32 4, %v1205
        %v1207 = vrot.slane %v1186, %v1206
        %v1208 = vlaneseq
        %v1209 = vshrl.u32 %v1208, 7
        %v1210 = vsub.s32 5, %v1209
        %v1211 = vrot.slane %v1186, %v1210
        %v1212 = vlaneseq
        %v1213 = vshrl.u32 %v1212, 7
        %v1214 = vsub.s32 6, %v1213
        %v1215 = vrot.slane %v1186, %v1214
        %v1216 = vlaneseq
        %v1217 = vshrl.u32 %v1216, 7
        %v1218 = vsub.s32 7, %v1217
        %v1219 = vrot.slane %v1186, %v1218
        %v1228 = vadd.f32 %v1178, %v1191
        %v1229 = vadd.f32 %v1179, %v1195
        %v1230 = vadd.f32 %v1180, %v1199
        %v1231 = vadd.f32 %v1181, %v1203
        %v1232 = vadd.f32 %v1182, %v1207
        %v1233 = vadd.f32 %v1183, %v1211
        %v1234 = vadd.f32 %v1184, %v1215
        %v1235 = vadd.f32 %v1185, %v1219
        %v1236 = vand.u32 2147483647, %v1228
        %vm1237 = vcmp.le.f32.partialorder %v1236, 0.7853982
        %vm1238 = vcmp.lt.s32.totalorder %v1228, 0
        %v1239 = vand.u32 %v1228, 2139095040
        %v1240 = vshrl.u32 %v1239, 23
        %v1241 = vsub.s32 %v1240, 127
        %v1242 = vand.u32 2147483647, %v1228
        %v1243 = vand.u32 %v1242, 8388607
        %v1244 = vor.u32 %v1243, 8388608
        %v1245 = vsub.s32 0, %v1244
        %v1246 = vadd.s32 %v1241, 1
        %vm1247 = vcmp.gt.s32.totalorder %v1246, 0
        %v1248 = vsel %vm1247, %v1246, 0
        %v1249 = vshrl.u32 %v1248, 5
        %v1250 = vand.u32 %v1248, 31
        %v1251 = vsub.s32 32, %v1250
        %v1252 = vshrl.u32 683565275, %v1251
        %v1253 = vshll.u32 683565275, %v1250
        %v1254 = vshrl.u32 2475754826, %v1251
        %v1255 = vor.u32 %v1253, %v1254
        %v1256 = vshll.u32 2475754826, %v1250
        %v1257 = vshrl.u32 2131351028, %v1251
        %v1258 = vor.u32 %v1256, %v1257
        %v1259 = vshll.u32 2131351028, %v1250
        %v1260 = vshrl.u32 2102212464, %v1251
        %v1261 = vor.u32 %v1259, %v1260
        %v1262 = vshll.u32 2102212464, %v1250
        %v1263 = vshrl.u32 920167782, %v1251
        %v1264 = vor.u32 %v1262, %v1263
        %v1265 = vshll.u32 920167782, %v1250
        %v1266 = vshrl.u32 1326507024, %v1251
        %v1267 = vor.u32 %v1265, %v1266
        %vm1268 = vcmp.lt.s32.totalorder %v1249, 1
        %vm1269 = vcmp.lt.s32.totalorder %v1249, 2
        %vm1270 = vcmp.lt.s32.totalorder %v1249, 3
        %vm1271 = vcmp.lt.s32.totalorder %v1249, 4
        %v1272 = vsel %vm1268, %v1252, %v1255
        %v1273 = vsel %vm1271, %v1261, 2102212464
        %v1274 = vsel %vm1270, %v1258, %v1273
        %v1275 = vsel %vm1269, %v1272, %v1274
        %v1276 = vsel %vm1268, %v1255, %v1258
        %v1277 = vsel %vm1271, %v1264, 920167782
        %v1278 = vsel %vm1270, %v1261, %v1277
        %v1279 = vsel %vm1269, %v1276, %v1278
        %v1280 = vsel %vm1268, %v1258, %v1261
        %v1281 = vsel %vm1271, %v1267, 1326507024
        %v1282 = vsel %vm1270, %v1264, %v1281
        %v1283 = vsel %vm1269, %v1280, %v1282
        %v1284 = vshll.u32 %v1244, 8
        %v1285 = vmul.u32.u64.compose %v1284, %v1283
        %v1286 = vextract.low.u32 %v1285
        %v1287 = vextract.high.u32 %v1285
        %v1288 = vmul.u32.u64.compose %v1284, %v1279
        %v1289 = vextract.low.u32 %v1288
        %v1290 = vextract.high.u32 %v1288
        %v1291 = vmul.u32 %v1284, %v1275
        %v1292 = vadd.s32 %v1287, %v1289
        %vm1293 = vc.u32 %v1287, %v1289
        %v1294 = vadd.s32 %v1290, 1
        %v1295 = vsel %vm1293, %v1294, %v1290
        %v1296 = vadd.s32 %v1291, %v1295
        %v1297 = vadd.s32 %v1296, 536870912
        %v1298 = vshrl.u32 %v1297, 30
        %v1299 = vshll.u32 %v1298, 30
        %v1300 = vsub.s32 %v1296, %v1299
        %vm1301 = vcmp.lt.s32.totalorder %v1300, 0
        %v1302 = vsub.s32 0, %v1300
        %v1303 = vsel %vm1301, %v1302, %v1300
        %v1304 = vclz %v1303
        %v1305 = vsub.s32 %v1304, 2
        %vm1306 = vcmp.gt.s32.totalorder 0, %v1305
        %v1307 = vsel %vm1306, 0, %v1305
        %v1308 = vsub.s32 32, %v1307
        %v1309 = vshll.u32 %v1300, %v1307
        %v1310 = vshrl.u32 %v1292, %v1308
        %v1311 = vor.u32 %v1309, %v1310
        %v1312 = vsub.s32 4294967266, %v1307
        %v1313 = vadd.s32 %v1312, 127
        %v1314 = vshll.u32 %v1313, 23
        %v1315 = vor.u32 4788187, %v1314
        %v1316 = vand.u32 2147483647, %v1315
        %v1318 = vcvt.s32.f32 %v1311
        %v1319 = vmul.f32 %v1318, %v1316
        %v1320 = vxor.u32 %v1319, 2147483648
        %v1321 = vsel %vm1238, %v1320, %v1319
        %v1322 = vsub.s32 4, %v1298
        %v1323 = vsel %vm1238, %v1322, %v1298
        %v1324 = vsel %vm1237, %v1228, %v1321
        %v1325 = vsel %vm1237, 0, %v1323
        %v1326 = vcosq.f32.pop %v1324
        %v1327 = vsinq.f32.pop %v1324
        %vm1328 = vweird.f32 %v1228
        %v1329 = vadd.s32 %v1325, 3
        %v1330 = vand.u32 %v1329, 3
        %vm1331 = vcmp.lt.s32.totalorder %v1330, 2
        %vm1332 = vcmp.eq.s32.totalorder %v1330, 0
        %v1333 = vxor.u32 %v1327, 2147483648
        %v1334 = vsel %vm1332, %v1326, %v1333
        %vm1335 = vcmp.eq.s32.totalorder %v1330, 2
        %v1336 = vxor.u32 %v1326, 2147483648
        %v1337 = vsel %vm1335, %v1336, %v1327
        %v1338 = vsel %vm1331, %v1334, %v1337
        %v1339 = vsel %vm1328, nan, %v1338
        %v1340 = vand.u32 2147483647, %v1229
        %vm1341 = vcmp.le.f32.partialorder %v1340, 0.7853982
        %vm1342 = vcmp.lt.s32.totalorder %v1229, 0
        %v1343 = vand.u32 %v1229, 2139095040
        %v1344 = vshrl.u32 %v1343, 23
        %v1345 = vsub.s32 %v1344, 127
        %v1346 = vand.u32 2147483647, %v1229
        %v1347 = vand.u32 %v1346, 8388607
        %v1348 = vor.u32 %v1347, 8388608
        %v1349 = vsub.s32 0, %v1348
        %v1350 = vadd.s32 %v1345, 1
        %vm1351 = vcmp.gt.s32.totalorder %v1350, 0
        %v1352 = vsel %vm1351, %v1350, 0
        %v1353 = vshrl.u32 %v1352, 5
        %v1354 = vand.u32 %v1352, 31
        %v1355 = vsub.s32 32, %v1354
        %v1356 = vshrl.u32 683565275, %v1355
        %v1357 = vshll.u32 683565275, %v1354
        %v1358 = vshrl.u32 2475754826, %v1355
        %v1359 = vor.u32 %v1357, %v1358
        %v1360 = vshll.u32 2475754826, %v1354
        %v1361 = vshrl.u32 2131351028, %v1355
        %v1362 = vor.u32 %v1360, %v1361
        %v1363 = vshll.u32 2131351028, %v1354
        %v1364 = vshrl.u32 2102212464, %v1355
        %v1365 = vor.u32 %v1363, %v1364
        %v1366 = vshll.u32 2102212464, %v1354
        %v1367 = vshrl.u32 920167782, %v1355
        %v1368 = vor.u32 %v1366, %v1367
        %v1369 = vshll.u32 920167782, %v1354
        %v1370 = vshrl.u32 1326507024, %v1355
        %v1371 = vor.u32 %v1369, %v1370
        %vm1372 = vcmp.lt.s32.totalorder %v1353, 1
        %vm1373 = vcmp.lt.s32.totalorder %v1353, 2
        %vm1374 = vcmp.lt.s32.totalorder %v1353, 3
        %vm1375 = vcmp.lt.s32.totalorder %v1353, 4
        %v1376 = vsel %vm1372, %v1356, %v1359
        %v1377 = vsel %vm1375, %v1365, 2102212464
        %v1378 = vsel %vm1374, %v1362, %v1377
        %v1379 = vsel %vm1373, %v1376, %v1378
        %v1380 = vsel %vm1372, %v1359, %v1362
        %v1381 = vsel %vm1375, %v1368, 920167782
        %v1382 = vsel %vm1374, %v1365, %v1381
        %v1383 = vsel %vm1373, %v1380, %v1382
        %v1384 = vsel %vm1372, %v1362, %v1365
        %v1385 = vsel %vm1375, %v1371, 1326507024
        %v1386 = vsel %vm1374, %v1368, %v1385
        %v1387 = vsel %vm1373, %v1384, %v1386
        %v1388 = vshll.u32 %v1348, 8
        %v1389 = vmul.u32.u64.compose %v1388, %v1387
        %v1390 = vextract.low.u32 %v1389
        %v1391 = vextract.high.u32 %v1389
        %v1392 = vmul.u32.u64.compose %v1388, %v1383
        %v1393 = vextract.low.u32 %v1392
        %v1394 = vextract.high.u32 %v1392
        %v1395 = vmul.u32 %v1388, %v1379
        %v1396 = vadd.s32 %v1391, %v1393
        %vm1397 = vc.u32 %v1391, %v1393
        %v1398 = vadd.s32 %v1394, 1
        %v1399 = vsel %vm1397, %v1398, %v1394
        %v1400 = vadd.s32 %v1395, %v1399
        %v1401 = vadd.s32 %v1400, 536870912
        %v1402 = vshrl.u32 %v1401, 30
        %v1403 = vshll.u32 %v1402, 30
        %v1404 = vsub.s32 %v1400, %v1403
        %vm1405 = vcmp.lt.s32.totalorder %v1404, 0
        %v1406 = vsub.s32 0, %v1404
        %v1407 = vsel %vm1405, %v1406, %v1404
        %v1408 = vclz %v1407
        %v1409 = vsub.s32 %v1408, 2
        %vm1410 = vcmp.gt.s32.totalorder 0, %v1409
        %v1411 = vsel %vm1410, 0, %v1409
        %v1412 = vsub.s32 32, %v1411
        %v1413 = vshll.u32 %v1404, %v1411
        %v1414 = vshrl.u32 %v1396, %v1412
        %v1415 = vor.u32 %v1413, %v1414
        %v1416 = vsub.s32 4294967266, %v1411
        %v1417 = vadd.s32 %v1416, 127
        %v1418 = vshll.u32 %v1417, 23
        %v1419 = vor.u32 4788187, %v1418
        %v1420 = vand.u32 2147483647, %v1419
        %v1422 = vcvt.s32.f32 %v1415
        %v1423 = vmul.f32 %v1422, %v1420
        %v1424 = vxor.u32 %v1423, 2147483648
        %v1425 = vsel %vm1342, %v1424, %v1423
        %v1426 = vsub.s32 4, %v1402
        %v1427 = vsel %vm1342, %v1426, %v1402
        %v1428 = vsel %vm1341, %v1229, %v1425
        %v1429 = vsel %vm1341, 0, %v1427
        %v1430 = vcosq.f32.pop %v1428
        %v1431 = vsinq.f32.pop %v1428
        %vm1432 = vweird.f32 %v1229
        %v1433 = vadd.s32 %v1429, 3
        %v1434 = vand.u32 %v1433, 3
        %vm1435 = vcmp.lt.s32.totalorder %v1434, 2
        %vm1436 = vcmp.eq.s32.totalorder %v1434, 0
        %v1437 = vxor.u32 %v1431, 2147483648
        %v1438 = vsel %vm1436, %v1430, %v1437
        %vm1439 = vcmp.eq.s32.totalorder %v1434, 2
        %v1440 = vxor.u32 %v1430, 2147483648
        %v1441 = vsel %vm1439, %v1440, %v1431
        %v1442 = vsel %vm1435, %v1438, %v1441
        %v1443 = vsel %vm1432, nan, %v1442
        %v1444 = vand.u32 2147483647, %v1230
        %vm1445 = vcmp.le.f32.partialorder %v1444, 0.7853982
        %vm1446 = vcmp.lt.s32.totalorder %v1230, 0
        %v1447 = vand.u32 %v1230, 2139095040
        %v1448 = vshrl.u32 %v1447, 23
        %v1449 = vsub.s32 %v1448, 127
        %v1450 = vand.u32 2147483647, %v1230
        %v1451 = vand.u32 %v1450, 8388607
        %v1452 = vor.u32 %v1451, 8388608
        %v1453 = vsub.s32 0, %v1452
        %v1454 = vadd.s32 %v1449, 1
        %vm1455 = vcmp.gt.s32.totalorder %v1454, 0
        %v1456 = vsel %vm1455, %v1454, 0
        %v1457 = vshrl.u32 %v1456, 5
        %v1458 = vand.u32 %v1456, 31
        %v1459 = vsub.s32 32, %v1458
        %v1460 = vshrl.u32 683565275, %v1459
        %v1461 = vshll.u32 683565275, %v1458
        %v1462 = vshrl.u32 2475754826, %v1459
        %v1463 = vor.u32 %v1461, %v1462
        %v1464 = vshll.u32 2475754826, %v1458
        %v1465 = vshrl.u32 2131351028, %v1459
        %v1466 = vor.u32 %v1464, %v1465
        %v1467 = vshll.u32 2131351028, %v1458
        %v1468 = vshrl.u32 2102212464, %v1459
        %v1469 = vor.u32 %v1467, %v1468
        %v1470 = vshll.u32 2102212464, %v1458
        %v1471 = vshrl.u32 920167782, %v1459
        %v1472 = vor.u32 %v1470, %v1471
        %v1473 = vshll.u32 920167782, %v1458
        %v1474 = vshrl.u32 1326507024, %v1459
        %v1475 = vor.u32 %v1473, %v1474
        %vm1476 = vcmp.lt.s32.totalorder %v1457, 1
        %vm1477 = vcmp.lt.s32.totalorder %v1457, 2
        %vm1478 = vcmp.lt.s32.totalorder %v1457, 3
        %vm1479 = vcmp.lt.s32.totalorder %v1457, 4
        %v1480 = vsel %vm1476, %v1460, %v1463
        %v1481 = vsel %vm1479, %v1469, 2102212464
        %v1482 = vsel %vm1478, %v1466, %v1481
        %v1483 = vsel %vm1477, %v1480, %v1482
        %v1484 = vsel %vm1476, %v1463, %v1466
        %v1485 = vsel %vm1479, %v1472, 920167782
        %v1486 = vsel %vm1478, %v1469, %v1485
        %v1487 = vsel %vm1477, %v1484, %v1486
        %v1488 = vsel %vm1476, %v1466, %v1469
        %v1489 = vsel %vm1479, %v1475, 1326507024
        %v1490 = vsel %vm1478, %v1472, %v1489
        %v1491 = vsel %vm1477, %v1488, %v1490
        %v1492 = vshll.u32 %v1452, 8
        %v1493 = vmul.u32.u64.compose %v1492, %v1491
        %v1494 = vextract.low.u32 %v1493
        %v1495 = vextract.high.u32 %v1493
        %v1496 = vmul.u32.u64.compose %v1492, %v1487
        %v1497 = vextract.low.u32 %v1496
        %v1498 = vextract.high.u32 %v1496
        %v1499 = vmul.u32 %v1492, %v1483
        %v1500 = vadd.s32 %v1495, %v1497
        %vm1501 = vc.u32 %v1495, %v1497
        %v1502 = vadd.s32 %v1498, 1
        %v1503 = vsel %vm1501, %v1502, %v1498
        %v1504 = vadd.s32 %v1499, %v1503
        %v1505 = vadd.s32 %v1504, 536870912
        %v1506 = vshrl.u32 %v1505, 30
        %v1507 = vshll.u32 %v1506, 30
        %v1508 = vsub.s32 %v1504, %v1507
        %vm1509 = vcmp.lt.s32.totalorder %v1508, 0
        %v1510 = vsub.s32 0, %v1508
        %v1511 = vsel %vm1509, %v1510, %v1508
        %v1512 = vclz %v1511
        %v1513 = vsub.s32 %v1512, 2
        %vm1514 = vcmp.gt.s32.totalorder 0, %v1513
        %v1515 = vsel %vm1514, 0, %v1513
        %v1516 = vsub.s32 32, %v1515
        %v1517 = vshll.u32 %v1508, %v1515
        %v1518 = vshrl.u32 %v1500, %v1516
        %v1519 = vor.u32 %v1517, %v1518
        %v1520 = vsub.s32 4294967266, %v1515
        %v1521 = vadd.s32 %v1520, 127
        %v1522 = vshll.u32 %v1521, 23
        %v1523 = vor.u32 4788187, %v1522
        %v1524 = vand.u32 2147483647, %v1523
        %v1526 = vcvt.s32.f32 %v1519
        %v1527 = vmul.f32 %v1526, %v1524
        %v1528 = vxor.u32 %v1527, 2147483648
        %v1529 = vsel %vm1446, %v1528, %v1527
        %v1530 = vsub.s32 4, %v1506
        %v1531 = vsel %vm1446, %v1530, %v1506
        %v1532 = vsel %vm1445, %v1230, %v1529
        %v1533 = vsel %vm1445, 0, %v1531
        %v1534 = vcosq.f32.pop %v1532
        %v1535 = vsinq.f32.pop %v1532
        %vm1536 = vweird.f32 %v1230
        %v1537 = vadd.s32 %v1533, 3
        %v1538 = vand.u32 %v1537, 3
        %vm1539 = vcmp.lt.s32.totalorder %v1538, 2
        %vm1540 = vcmp.eq.s32.totalorder %v1538, 0
        %v1541 = vxor.u32 %v1535, 2147483648
        %v1542 = vsel %vm1540, %v1534, %v1541
        %vm1543 = vcmp.eq.s32.totalorder %v1538, 2
        %v1544 = vxor.u32 %v1534, 2147483648
        %v1545 = vsel %vm1543, %v1544, %v1535
        %v1546 = vsel %vm1539, %v1542, %v1545
        %v1547 = vsel %vm1536, nan, %v1546
        %v1548 = vand.u32 2147483647, %v1231
        %vm1549 = vcmp.le.f32.partialorder %v1548, 0.7853982
        %vm1550 = vcmp.lt.s32.totalorder %v1231, 0
        %v1551 = vand.u32 %v1231, 2139095040
        %v1552 = vshrl.u32 %v1551, 23
        %v1553 = vsub.s32 %v1552, 127
        %v1554 = vand.u32 2147483647, %v1231
        %v1555 = vand.u32 %v1554, 8388607
        %v1556 = vor.u32 %v1555, 8388608
        %v1557 = vsub.s32 0, %v1556
        %v1558 = vadd.s32 %v1553, 1
        %vm1559 = vcmp.gt.s32.totalorder %v1558, 0
        %v1560 = vsel %vm1559, %v1558, 0
        %v1561 = vshrl.u32 %v1560, 5
        %v1562 = vand.u32 %v1560, 31
        %v1563 = vsub.s32 32, %v1562
        %v1564 = vshrl.u32 683565275, %v1563
        %v1565 = vshll.u32 683565275, %v1562
        %v1566 = vshrl.u32 2475754826, %v1563
        %v1567 = vor.u32 %v1565, %v1566
        %v1568 = vshll.u32 2475754826, %v1562
        %v1569 = vshrl.u32 2131351028, %v1563
        %v1570 = vor.u32 %v1568, %v1569
        %v1571 = vshll.u32 2131351028, %v1562
        %v1572 = vshrl.u32 2102212464, %v1563
        %v1573 = vor.u32 %v1571, %v1572
        %v1574 = vshll.u32 2102212464, %v1562
        %v1575 = vshrl.u32 920167782, %v1563
        %v1576 = vor.u32 %v1574, %v1575
        %v1577 = vshll.u32 920167782, %v1562
        %v1578 = vshrl.u32 1326507024, %v1563
        %v1579 = vor.u32 %v1577, %v1578
        %vm1580 = vcmp.lt.s32.totalorder %v1561, 1
        %vm1581 = vcmp.lt.s32.totalorder %v1561, 2
        %vm1582 = vcmp.lt.s32.totalorder %v1561, 3
        %vm1583 = vcmp.lt.s32.totalorder %v1561, 4
        %v1584 = vsel %vm1580, %v1564, %v1567
        %v1585 = vsel %vm1583, %v1573, 2102212464
        %v1586 = vsel %vm1582, %v1570, %v1585
        %v1587 = vsel %vm1581, %v1584, %v1586
        %v1588 = vsel %vm1580, %v1567, %v1570
        %v1589 = vsel %vm1583, %v1576, 920167782
        %v1590 = vsel %vm1582, %v1573, %v1589
        %v1591 = vsel %vm1581, %v1588, %v1590
        %v1592 = vsel %vm1580, %v1570, %v1573
        %v1593 = vsel %vm1583, %v1579, 1326507024
        %v1594 = vsel %vm1582, %v1576, %v1593
        %v1595 = vsel %vm1581, %v1592, %v1594
        %v1596 = vshll.u32 %v1556, 8
        %v1597 = vmul.u32.u64.compose %v1596, %v1595
        %v1598 = vextract.low.u32 %v1597
        %v1599 = vextract.high.u32 %v1597
        %v1600 = vmul.u32.u64.compose %v1596, %v1591
        %v1601 = vextract.low.u32 %v1600
        %v1602 = vextract.high.u32 %v1600
        %v1603 = vmul.u32 %v1596, %v1587
        %v1604 = vadd.s32 %v1599, %v1601
        %vm1605 = vc.u32 %v1599, %v1601
        %v1606 = vadd.s32 %v1602, 1
        %v1607 = vsel %vm1605, %v1606, %v1602
        %v1608 = vadd.s32 %v1603, %v1607
        %v1609 = vadd.s32 %v1608, 536870912
        %v1610 = vshrl.u32 %v1609, 30
        %v1611 = vshll.u32 %v1610, 30
        %v1612 = vsub.s32 %v1608, %v1611
        %vm1613 = vcmp.lt.s32.totalorder %v1612, 0
        %v1614 = vsub.s32 0, %v1612
        %v1615 = vsel %vm1613, %v1614, %v1612
        %v1616 = vclz %v1615
        %v1617 = vsub.s32 %v1616, 2
        %vm1618 = vcmp.gt.s32.totalorder 0, %v1617
        %v1619 = vsel %vm1618, 0, %v1617
        %v1620 = vsub.s32 32, %v1619
        %v1621 = vshll.u32 %v1612, %v1619
        %v1622 = vshrl.u32 %v1604, %v1620
        %v1623 = vor.u32 %v1621, %v1622
        %v1624 = vsub.s32 4294967266, %v1619
        %v1625 = vadd.s32 %v1624, 127
        %v1626 = vshll.u32 %v1625, 23
        %v1627 = vor.u32 4788187, %v1626
        %v1628 = vand.u32 2147483647, %v1627
        %v1630 = vcvt.s32.f32 %v1623
        %v1631 = vmul.f32 %v1630, %v1628
        %v1632 = vxor.u32 %v1631, 2147483648
        %v1633 = vsel %vm1550, %v1632, %v1631
        %v1634 = vsub.s32 4, %v1610
        %v1635 = vsel %vm1550, %v1634, %v1610
        %v1636 = vsel %vm1549, %v1231, %v1633
        %v1637 = vsel %vm1549, 0, %v1635
        %v1638 = vcosq.f32.pop %v1636
        %v1639 = vsinq.f32.pop %v1636
        %vm1640 = vweird.f32 %v1231
        %v1641 = vadd.s32 %v1637, 3
        %v1642 = vand.u32 %v1641, 3
        %vm1643 = vcmp.lt.s32.totalorder %v1642, 2
        %vm1644 = vcmp.eq.s32.totalorder %v1642, 0
        %v1645 = vxor.u32 %v1639, 2147483648
        %v1646 = vsel %vm1644, %v1638, %v1645
        %vm1647 = vcmp.eq.s32.totalorder %v1642, 2
        %v1648 = vxor.u32 %v1638, 2147483648
        %v1649 = vsel %vm1647, %v1648, %v1639
        %v1650 = vsel %vm1643, %v1646, %v1649
        %v1651 = vsel %vm1640, nan, %v1650
        %v1652 = vand.u32 2147483647, %v1232
        %vm1653 = vcmp.le.f32.partialorder %v1652, 0.7853982
        %vm1654 = vcmp.lt.s32.totalorder %v1232, 0
        %v1655 = vand.u32 %v1232, 2139095040
        %v1656 = vshrl.u32 %v1655, 23
        %v1657 = vsub.s32 %v1656, 127
        %v1658 = vand.u32 2147483647, %v1232
        %v1659 = vand.u32 %v1658, 8388607
        %v1660 = vor.u32 %v1659, 8388608
        %v1661 = vsub.s32 0, %v1660
        %v1662 = vadd.s32 %v1657, 1
        %vm1663 = vcmp.gt.s32.totalorder %v1662, 0
        %v1664 = vsel %vm1663, %v1662, 0
        %v1665 = vshrl.u32 %v1664, 5
        %v1666 = vand.u32 %v1664, 31
        %v1667 = vsub.s32 32, %v1666
        %v1668 = vshrl.u32 683565275, %v1667
        %v1669 = vshll.u32 683565275, %v1666
        %v1670 = vshrl.u32 2475754826, %v1667
        %v1671 = vor.u32 %v1669, %v1670
        %v1672 = vshll.u32 2475754826, %v1666
        %v1673 = vshrl.u32 2131351028, %v1667
        %v1674 = vor.u32 %v1672, %v1673
        %v1675 = vshll.u32 2131351028, %v1666
        %v1676 = vshrl.u32 2102212464, %v1667
        %v1677 = vor.u32 %v1675, %v1676
        %v1678 = vshll.u32 2102212464, %v1666
        %v1679 = vshrl.u32 920167782, %v1667
        %v1680 = vor.u32 %v1678, %v1679
        %v1681 = vshll.u32 920167782, %v1666
        %v1682 = vshrl.u32 1326507024, %v1667
        %v1683 = vor.u32 %v1681, %v1682
        %vm1684 = vcmp.lt.s32.totalorder %v1665, 1
        %vm1685 = vcmp.lt.s32.totalorder %v1665, 2
        %vm1686 = vcmp.lt.s32.totalorder %v1665, 3
        %vm1687 = vcmp.lt.s32.totalorder %v1665, 4
        %v1688 = vsel %vm1684, %v1668, %v1671
        %v1689 = vsel %vm1687, %v1677, 2102212464
        %v1690 = vsel %vm1686, %v1674, %v1689
        %v1691 = vsel %vm1685, %v1688, %v1690
        %v1692 = vsel %vm1684, %v1671, %v1674
        %v1693 = vsel %vm1687, %v1680, 920167782
        %v1694 = vsel %vm1686, %v1677, %v1693
        %v1695 = vsel %vm1685, %v1692, %v1694
        %v1696 = vsel %vm1684, %v1674, %v1677
        %v1697 = vsel %vm1687, %v1683, 1326507024
        %v1698 = vsel %vm1686, %v1680, %v1697
        %v1699 = vsel %vm1685, %v1696, %v1698
        %v1700 = vshll.u32 %v1660, 8
        %v1701 = vmul.u32.u64.compose %v1700, %v1699
        %v1702 = vextract.low.u32 %v1701
        %v1703 = vextract.high.u32 %v1701
        %v1704 = vmul.u32.u64.compose %v1700, %v1695
        %v1705 = vextract.low.u32 %v1704
        %v1706 = vextract.high.u32 %v1704
        %v1707 = vmul.u32 %v1700, %v1691
        %v1708 = vadd.s32 %v1703, %v1705
        %vm1709 = vc.u32 %v1703, %v1705
        %v1710 = vadd.s32 %v1706, 1
        %v1711 = vsel %vm1709, %v1710, %v1706
        %v1712 = vadd.s32 %v1707, %v1711
        %v1713 = vadd.s32 %v1712, 536870912
        %v1714 = vshrl.u32 %v1713, 30
        %v1715 = vshll.u32 %v1714, 30
        %v1716 = vsub.s32 %v1712, %v1715
        %vm1717 = vcmp.lt.s32.totalorder %v1716, 0
        %v1718 = vsub.s32 0, %v1716
        %v1719 = vsel %vm1717, %v1718, %v1716
        %v1720 = vclz %v1719
        %v1721 = vsub.s32 %v1720, 2
        %vm1722 = vcmp.gt.s32.totalorder 0, %v1721
        %v1723 = vsel %vm1722, 0, %v1721
        %v1724 = vsub.s32 32, %v1723
        %v1725 = vshll.u32 %v1716, %v1723
        %v1726 = vshrl.u32 %v1708, %v1724
        %v1727 = vor.u32 %v1725, %v1726
        %v1728 = vsub.s32 4294967266, %v1723
        %v1729 = vadd.s32 %v1728, 127
        %v1730 = vshll.u32 %v1729, 23
        %v1731 = vor.u32 4788187, %v1730
        %v1732 = vand.u32 2147483647, %v1731
        %v1734 = vcvt.s32.f32 %v1727
        %v1735 = vmul.f32 %v1734, %v1732
        %v1736 = vxor.u32 %v1735, 2147483648
        %v1737 = vsel %vm1654, %v1736, %v1735
        %v1738 = vsub.s32 4, %v1714
        %v1739 = vsel %vm1654, %v1738, %v1714
        %v1740 = vsel %vm1653, %v1232, %v1737
        %v1741 = vsel %vm1653, 0, %v1739
        %v1742 = vcosq.f32.pop %v1740
        %v1743 = vsinq.f32.pop %v1740
        %vm1744 = vweird.f32 %v1232
        %v1745 = vadd.s32 %v1741, 3
        %v1746 = vand.u32 %v1745, 3
        %vm1747 = vcmp.lt.s32.totalorder %v1746, 2
        %vm1748 = vcmp.eq.s32.totalorder %v1746, 0
        %v1749 = vxor.u32 %v1743, 2147483648
        %v1750 = vsel %vm1748, %v1742, %v1749
        %vm1751 = vcmp.eq.s32.totalorder %v1746, 2
        %v1752 = vxor.u32 %v1742, 2147483648
        %v1753 = vsel %vm1751, %v1752, %v1743
        %v1754 = vsel %vm1747, %v1750, %v1753
        %v1755 = vsel %vm1744, nan, %v1754
        %v1756 = vand.u32 2147483647, %v1233
        %vm1757 = vcmp.le.f32.partialorder %v1756, 0.7853982
        %vm1758 = vcmp.lt.s32.totalorder %v1233, 0
        %v1759 = vand.u32 %v1233, 2139095040
        %v1760 = vshrl.u32 %v1759, 23
        %v1761 = vsub.s32 %v1760, 127
        %v1762 = vand.u32 2147483647, %v1233
        %v1763 = vand.u32 %v1762, 8388607
        %v1764 = vor.u32 %v1763, 8388608
        %v1765 = vsub.s32 0, %v1764
        %v1766 = vadd.s32 %v1761, 1
        %vm1767 = vcmp.gt.s32.totalorder %v1766, 0
        %v1768 = vsel %vm1767, %v1766, 0
        %v1769 = vshrl.u32 %v1768, 5
        %v1770 = vand.u32 %v1768, 31
        %v1771 = vsub.s32 32, %v1770
        %v1772 = vshrl.u32 683565275, %v1771
        %v1773 = vshll.u32 683565275, %v1770
        %v1774 = vshrl.u32 2475754826, %v1771
        %v1775 = vor.u32 %v1773, %v1774
        %v1776 = vshll.u32 2475754826, %v1770
        %v1777 = vshrl.u32 2131351028, %v1771
        %v1778 = vor.u32 %v1776, %v1777
        %v1779 = vshll.u32 2131351028, %v1770
        %v1780 = vshrl.u32 2102212464, %v1771
        %v1781 = vor.u32 %v1779, %v1780
        %v1782 = vshll.u32 2102212464, %v1770
        %v1783 = vshrl.u32 920167782, %v1771
        %v1784 = vor.u32 %v1782, %v1783
        %v1785 = vshll.u32 920167782, %v1770
        %v1786 = vshrl.u32 1326507024, %v1771
        %v1787 = vor.u32 %v1785, %v1786
        %vm1788 = vcmp.lt.s32.totalorder %v1769, 1
        %vm1789 = vcmp.lt.s32.totalorder %v1769, 2
        %vm1790 = vcmp.lt.s32.totalorder %v1769, 3
        %vm1791 = vcmp.lt.s32.totalorder %v1769, 4
        %v1792 = vsel %vm1788, %v1772, %v1775
        %v1793 = vsel %vm1791, %v1781, 2102212464
        %v1794 = vsel %vm1790, %v1778, %v1793
        %v1795 = vsel %vm1789, %v1792, %v1794
        %v1796 = vsel %vm1788, %v1775, %v1778
        %v1797 = vsel %vm1791, %v1784, 920167782
        %v1798 = vsel %vm1790, %v1781, %v1797
        %v1799 = vsel %vm1789, %v1796, %v1798
        %v1800 = vsel %vm1788, %v1778, %v1781
        %v1801 = vsel %vm1791, %v1787, 1326507024
        %v1802 = vsel %vm1790, %v1784, %v1801
        %v1803 = vsel %vm1789, %v1800, %v1802
        %v1804 = vshll.u32 %v1764, 8
        %v1805 = vmul.u32.u64.compose %v1804, %v1803
        %v1806 = vextract.low.u32 %v1805
        %v1807 = vextract.high.u32 %v1805
        %v1808 = vmul.u32.u64.compose %v1804, %v1799
        %v1809 = vextract.low.u32 %v1808
        %v1810 = vextract.high.u32 %v1808
        %v1811 = vmul.u32 %v1804, %v1795
        %v1812 = vadd.s32 %v1807, %v1809
        %vm1813 = vc.u32 %v1807, %v1809
        %v1814 = vadd.s32 %v1810, 1
        %v1815 = vsel %vm1813, %v1814, %v1810
        %v1816 = vadd.s32 %v1811, %v1815
        %v1817 = vadd.s32 %v1816, 536870912
        %v1818 = vshrl.u32 %v1817, 30
        %v1819 = vshll.u32 %v1818, 30
        %v1820 = vsub.s32 %v1816, %v1819
        %vm1821 = vcmp.lt.s32.totalorder %v1820, 0
        %v1822 = vsub.s32 0, %v1820
        %v1823 = vsel %vm1821, %v1822, %v1820
        %v1824 = vclz %v1823
        %v1825 = vsub.s32 %v1824, 2
        %vm1826 = vcmp.gt.s32.totalorder 0, %v1825
        %v1827 = vsel %vm1826, 0, %v1825
        %v1828 = vsub.s32 32, %v1827
        %v1829 = vshll.u32 %v1820, %v1827
        %v1830 = vshrl.u32 %v1812, %v1828
        %v1831 = vor.u32 %v1829, %v1830
        %v1832 = vsub.s32 4294967266, %v1827
        %v1833 = vadd.s32 %v1832, 127
        %v1834 = vshll.u32 %v1833, 23
        %v1835 = vor.u32 4788187, %v1834
        %v1836 = vand.u32 2147483647, %v1835
        %v1838 = vcvt.s32.f32 %v1831
        %v1839 = vmul.f32 %v1838, %v1836
        %v1840 = vxor.u32 %v1839, 2147483648
        %v1841 = vsel %vm1758, %v1840, %v1839
        %v1842 = vsub.s32 4, %v1818
        %v1843 = vsel %vm1758, %v1842, %v1818
        %v1844 = vsel %vm1757, %v1233, %v1841
        %v1845 = vsel %vm1757, 0, %v1843
        %v1846 = vcosq.f32.pop %v1844
        %v1847 = vsinq.f32.pop %v1844
        %vm1848 = vweird.f32 %v1233
        %v1849 = vadd.s32 %v1845, 3
        %v1850 = vand.u32 %v1849, 3
        %vm1851 = vcmp.lt.s32.totalorder %v1850, 2
        %vm1852 = vcmp.eq.s32.totalorder %v1850, 0
        %v1853 = vxor.u32 %v1847, 2147483648
        %v1854 = vsel %vm1852, %v1846, %v1853
        %vm1855 = vcmp.eq.s32.totalorder %v1850, 2
        %v1856 = vxor.u32 %v1846, 2147483648
        %v1857 = vsel %vm1855, %v1856, %v1847
        %v1858 = vsel %vm1851, %v1854, %v1857
        %v1859 = vsel %vm1848, nan, %v1858
        %v1860 = vand.u32 2147483647, %v1234
        %vm1861 = vcmp.le.f32.partialorder %v1860, 0.7853982
        %vm1862 = vcmp.lt.s32.totalorder %v1234, 0
        %v1863 = vand.u32 %v1234, 2139095040
        %v1864 = vshrl.u32 %v1863, 23
        %v1865 = vsub.s32 %v1864, 127
        %v1866 = vand.u32 2147483647, %v1234
        %v1867 = vand.u32 %v1866, 8388607
        %v1868 = vor.u32 %v1867, 8388608
        %v1869 = vsub.s32 0, %v1868
        %v1870 = vadd.s32 %v1865, 1
        %vm1871 = vcmp.gt.s32.totalorder %v1870, 0
        %v1872 = vsel %vm1871, %v1870, 0
        %v1873 = vshrl.u32 %v1872, 5
        %v1874 = vand.u32 %v1872, 31
        %v1875 = vsub.s32 32, %v1874
        %v1876 = vshrl.u32 683565275, %v1875
        %v1877 = vshll.u32 683565275, %v1874
        %v1878 = vshrl.u32 2475754826, %v1875
        %v1879 = vor.u32 %v1877, %v1878
        %v1880 = vshll.u32 2475754826, %v1874
        %v1881 = vshrl.u32 2131351028, %v1875
        %v1882 = vor.u32 %v1880, %v1881
        %v1883 = vshll.u32 2131351028, %v1874
        %v1884 = vshrl.u32 2102212464, %v1875
        %v1885 = vor.u32 %v1883, %v1884
        %v1886 = vshll.u32 2102212464, %v1874
        %v1887 = vshrl.u32 920167782, %v1875
        %v1888 = vor.u32 %v1886, %v1887
        %v1889 = vshll.u32 920167782, %v1874
        %v1890 = vshrl.u32 1326507024, %v1875
        %v1891 = vor.u32 %v1889, %v1890
        %vm1892 = vcmp.lt.s32.totalorder %v1873, 1
        %vm1893 = vcmp.lt.s32.totalorder %v1873, 2
        %vm1894 = vcmp.lt.s32.totalorder %v1873, 3
        %vm1895 = vcmp.lt.s32.totalorder %v1873, 4
        %v1896 = vsel %vm1892, %v1876, %v1879
        %v1897 = vsel %vm1895, %v1885, 2102212464
        %v1898 = vsel %vm1894, %v1882, %v1897
        %v1899 = vsel %vm1893, %v1896, %v1898
        %v1900 = vsel %vm1892, %v1879, %v1882
        %v1901 = vsel %vm1895, %v1888, 920167782
        %v1902 = vsel %vm1894, %v1885, %v1901
        %v1903 = vsel %vm1893, %v1900, %v1902
        %v1904 = vsel %vm1892, %v1882, %v1885
        %v1905 = vsel %vm1895, %v1891, 1326507024
        %v1906 = vsel %vm1894, %v1888, %v1905
        %v1907 = vsel %vm1893, %v1904, %v1906
        %v1908 = vshll.u32 %v1868, 8
        %v1909 = vmul.u32.u64.compose %v1908, %v1907
        %v1910 = vextract.low.u32 %v1909
        %v1911 = vextract.high.u32 %v1909
        %v1912 = vmul.u32.u64.compose %v1908, %v1903
        %v1913 = vextract.low.u32 %v1912
        %v1914 = vextract.high.u32 %v1912
        %v1915 = vmul.u32 %v1908, %v1899
        %v1916 = vadd.s32 %v1911, %v1913
        %vm1917 = vc.u32 %v1911, %v1913
        %v1918 = vadd.s32 %v1914, 1
        %v1919 = vsel %vm1917, %v1918, %v1914
        %v1920 = vadd.s32 %v1915, %v1919
        %v1921 = vadd.s32 %v1920, 536870912
        %v1922 = vshrl.u32 %v1921, 30
        %v1923 = vshll.u32 %v1922, 30
        %v1924 = vsub.s32 %v1920, %v1923
        %vm1925 = vcmp.lt.s32.totalorder %v1924, 0
        %v1926 = vsub.s32 0, %v1924
        %v1927 = vsel %vm1925, %v1926, %v1924
        %v1928 = vclz %v1927
        %v1929 = vsub.s32 %v1928, 2
        %vm1930 = vcmp.gt.s32.totalorder 0, %v1929
        %v1931 = vsel %vm1930, 0, %v1929
        %v1932 = vsub.s32 32, %v1931
        %v1933 = vshll.u32 %v1924, %v1931
        %v1934 = vshrl.u32 %v1916, %v1932
        %v1935 = vor.u32 %v1933, %v1934
        %v1936 = vsub.s32 4294967266, %v1931
        %v1937 = vadd.s32 %v1936, 127
        %v1938 = vshll.u32 %v1937, 23
        %v1939 = vor.u32 4788187, %v1938
        %v1940 = vand.u32 2147483647, %v1939
        %v1942 = vcvt.s32.f32 %v1935
        %v1943 = vmul.f32 %v1942, %v1940
        %v1944 = vxor.u32 %v1943, 2147483648
        %v1945 = vsel %vm1862, %v1944, %v1943
        %v1946 = vsub.s32 4, %v1922
        %v1947 = vsel %vm1862, %v1946, %v1922
        %v1948 = vsel %vm1861, %v1234, %v1945
        %v1949 = vsel %vm1861, 0, %v1947
        %v1950 = vcosq.f32.pop %v1948
        %v1951 = vsinq.f32.pop %v1948
        %vm1952 = vweird.f32 %v1234
        %v1953 = vadd.s32 %v1949, 3
        %v1954 = vand.u32 %v1953, 3
        %vm1955 = vcmp.lt.s32.totalorder %v1954, 2
        %vm1956 = vcmp.eq.s32.totalorder %v1954, 0
        %v1957 = vxor.u32 %v1951, 2147483648
        %v1958 = vsel %vm1956, %v1950, %v1957
        %vm1959 = vcmp.eq.s32.totalorder %v1954, 2
        %v1960 = vxor.u32 %v1950, 2147483648
        %v1961 = vsel %vm1959, %v1960, %v1951
        %v1962 = vsel %vm1955, %v1958, %v1961
        %v1963 = vsel %vm1952, nan, %v1962
        %v1964 = vand.u32 2147483647, %v1235
        %vm1965 = vcmp.le.f32.partialorder %v1964, 0.7853982
        %vm1966 = vcmp.lt.s32.totalorder %v1235, 0
        %v1967 = vand.u32 %v1235, 2139095040
        %v1968 = vshrl.u32 %v1967, 23
        %v1969 = vsub.s32 %v1968, 127
        %v1970 = vand.u32 2147483647, %v1235
        %v1971 = vand.u32 %v1970, 8388607
        %v1972 = vor.u32 %v1971, 8388608
        %v1973 = vsub.s32 0, %v1972
        %v1974 = vadd.s32 %v1969, 1
        %vm1975 = vcmp.gt.s32.totalorder %v1974, 0
        %v1976 = vsel %vm1975, %v1974, 0
        %v1977 = vshrl.u32 %v1976, 5
        %v1978 = vand.u32 %v1976, 31
        %v1979 = vsub.s32 32, %v1978
        %v1980 = vshrl.u32 683565275, %v1979
        %v1981 = vshll.u32 683565275, %v1978
        %v1982 = vshrl.u32 2475754826, %v1979
        %v1983 = vor.u32 %v1981, %v1982
        %v1984 = vshll.u32 2475754826, %v1978
        %v1985 = vshrl.u32 2131351028, %v1979
        %v1986 = vor.u32 %v1984, %v1985
        %v1987 = vshll.u32 2131351028, %v1978
        %v1988 = vshrl.u32 2102212464, %v1979
        %v1989 = vor.u32 %v1987, %v1988
        %v1990 = vshll.u32 2102212464, %v1978
        %v1991 = vshrl.u32 920167782, %v1979
        %v1992 = vor.u32 %v1990, %v1991
        %v1993 = vshll.u32 920167782, %v1978
        %v1994 = vshrl.u32 1326507024, %v1979
        %v1995 = vor.u32 %v1993, %v1994
        %vm1996 = vcmp.lt.s32.totalorder %v1977, 1
        %vm1997 = vcmp.lt.s32.totalorder %v1977, 2
        %vm1998 = vcmp.lt.s32.totalorder %v1977, 3
        %vm1999 = vcmp.lt.s32.totalorder %v1977, 4
        %v2000 = vsel %vm1996, %v1980, %v1983
        %v2001 = vsel %vm1999, %v1989, 2102212464
        %v2002 = vsel %vm1998, %v1986, %v2001
        %v2003 = vsel %vm1997, %v2000, %v2002
        %v2004 = vsel %vm1996, %v1983, %v1986
        %v2005 = vsel %vm1999, %v1992, 920167782
        %v2006 = vsel %vm1998, %v1989, %v2005
        %v2007 = vsel %vm1997, %v2004, %v2006
        %v2008 = vsel %vm1996, %v1986, %v1989
        %v2009 = vsel %vm1999, %v1995, 1326507024
        %v2010 = vsel %vm1998, %v1992, %v2009
        %v2011 = vsel %vm1997, %v2008, %v2010
        %v2012 = vshll.u32 %v1972, 8
        %v2013 = vmul.u32.u64.compose %v2012, %v2011
        %v2014 = vextract.low.u32 %v2013
        %v2015 = vextract.high.u32 %v2013
        %v2016 = vmul.u32.u64.compose %v2012, %v2007
        %v2017 = vextract.low.u32 %v2016
        %v2018 = vextract.high.u32 %v2016
        %v2019 = vmul.u32 %v2012, %v2003
        %v2020 = vadd.s32 %v2015, %v2017
        %vm2021 = vc.u32 %v2015, %v2017
        %v2022 = vadd.s32 %v2018, 1
        %v2023 = vsel %vm2021, %v2022, %v2018
        %v2024 = vadd.s32 %v2019, %v2023
        %v2025 = vadd.s32 %v2024, 536870912
        %v2026 = vshrl.u32 %v2025, 30
        %v2027 = vshll.u32 %v2026, 30
        %v2028 = vsub.s32 %v2024, %v2027
        %vm2029 = vcmp.lt.s32.totalorder %v2028, 0
        %v2030 = vsub.s32 0, %v2028
        %v2031 = vsel %vm2029, %v2030, %v2028
        %v2032 = vclz %v2031
        %v2033 = vsub.s32 %v2032, 2
        %vm2034 = vcmp.gt.s32.totalorder 0, %v2033
        %v2035 = vsel %vm2034, 0, %v2033
        %v2036 = vsub.s32 32, %v2035
        %v2037 = vshll.u32 %v2028, %v2035
        %v2038 = vshrl.u32 %v2020, %v2036
        %v2039 = vor.u32 %v2037, %v2038
        %v2040 = vsub.s32 4294967266, %v2035
        %v2041 = vadd.s32 %v2040, 127
        %v2042 = vshll.u32 %v2041, 23
        %v2043 = vor.u32 4788187, %v2042
        %v2044 = vand.u32 2147483647, %v2043
        %v2046 = vcvt.s32.f32 %v2039
        %v2047 = vmul.f32 %v2046, %v2044
        %v2048 = vxor.u32 %v2047, 2147483648
        %v2049 = vsel %vm1966, %v2048, %v2047
        %v2050 = vsub.s32 4, %v2026
        %v2051 = vsel %vm1966, %v2050, %v2026
        %v2052 = vsel %vm1965, %v1235, %v2049
        %v2053 = vsel %vm1965, 0, %v2051
        %v2054 = vcosq.f32.pop %v2052
        %v2055 = vsinq.f32.pop %v2052
        %vm2056 = vweird.f32 %v1235
        %v2057 = vadd.s32 %v2053, 3
        %v2058 = vand.u32 %v2057, 3
        %vm2059 = vcmp.lt.s32.totalorder %v2058, 2
        %vm2060 = vcmp.eq.s32.totalorder %v2058, 0
        %v2061 = vxor.u32 %v2055, 2147483648
        %v2062 = vsel %vm2060, %v2054, %v2061
        %vm2063 = vcmp.eq.s32.totalorder %v2058, 2
        %v2064 = vxor.u32 %v2054, 2147483648
        %v2065 = vsel %vm2063, %v2064, %v2055
        %v2066 = vsel %vm2059, %v2062, %v2065
        %v2067 = vsel %vm2056, nan, %v2066
        %2068 = vst [vmem:[%s239] sm:$0xff] %v1339
        %2069 = vst [vmem:[%s239 + $0x8] sm:$0xff] %v1443
        %2070 = vst [vmem:[%s239 + $0x10] sm:$0xff] %v1547
        %2071 = vst [vmem:[%s239 + $0x18] sm:$0xff] %v1651
        %2072 = vst [vmem:[%s239 + $0x20] sm:$0xff] %v1755
        %2073 = vst [vmem:[%s239 + $0x28] sm:$0xff] %v1859
        %2074 = vst [vmem:[%s239 + $0x30] sm:$0xff] %v1963
        %2075 = vst [vmem:[%s239 + $0x38] sm:$0xff] %v2067
        %s2076 = sand.u32 %s119, 1
        %s2077 = scalar_lea.sflag [#allocation4], %s2076
        %s2078 = sand.u32 %s119, 1
        %s2079 = smul.addr %s2078, 64
        %s2080 = scalar_lea.vmem [#allocation8], %s2079
        // Predicated region
        $region49: #{tpu_custom_call.1} parent=35 // pred_check
          %p2081 = pneg %p129
        $region50: #{tpu_custom_call.1} parent=35 // pred_check_branch
          %2083 = sbr.rel (%p2081) target = $region52
        $region51: #{tpu_custom_call.1} parent=35 // pred_region
          %s2085 = ssub.s32 1024, 1024
          %2086 = vsyncadd %s2077, %s2085
          %s2087 = smul.addr %s22, 8
          %s2088 = smul.addr %s2087, 128
          %s2089 = scalar_lea.hbm %s4, %s2088
          %s2091 = sshll.u32 %s2080, 4
          %s2092 = int_to_ptr.vmem [resolvable:$true] %s2091
          %2094 = dma.vmem_to_hbm [thread:$0]  %s2092, 1024, %s2089, %s2077
        $region52: #{tpu_custom_call.1} parent=35 // pred_fallthru
          _
      $region36: #{tpu_custom_call.1} parent=5 // pred_fallthru
        _
      %p2095 = scmp.le.s32.totalorder 2, %s17
      // Predicated region
      $region53: #{tpu_custom_call.1} parent=5 // pred_check
        %p2096 = pneg %p2095
      $region54: #{tpu_custom_call.1} parent=5 // pred_check_branch
        %2098 = sbr.rel (%p2096) target = $region56
      $region55: #{tpu_custom_call.1} parent=5 // pred_region
        %s2099 = ssub.s32 %s17, 2
        // Predicated region
        $region57: #{tpu_custom_call.1} parent=55 // pred_check
          %p2100 = pneg %p135
        $region58: #{tpu_custom_call.1} parent=55 // pred_check_branch
          %2102 = sbr.rel (%p2100) target = $region60
        $region59: #{tpu_custom_call.1} parent=55 // pred_region
          %s2103 = sand.u32 %s120, 1
          %s2104 = scalar_lea.sflag [#allocation4], %s2103
          %s2105 = sand.u32 %s120, 1
          %s2106 = smul.addr %s2105, 64
          %s2107 = scalar_lea.vmem [#allocation8], %s2106
          %2108 = dma.done %s2104, 1024
        $region60: #{tpu_custom_call.1} parent=55 // pred_fallthru
          _
      $region56: #{tpu_custom_call.1} parent=5 // pred_fallthru
        _
    $region6: #{tpu_custom_call.1} parent=1 // loop_footer
      %s21 = sadd.s32 1, %s17
    $region7: #{tpu_custom_call.1} parent=1 // loop_footer_branch
      %16 = sbr.rel target = $region3
    $region8: #{tpu_custom_call.1} parent=1 // loop_exit
      _
    %2109 = vsyncpa [#allocation3], 1
    %s2110 = scalar_lea.sflag [#allocation3], 1
    %2111 = vsyncpa %s2110, 1
    %2112 = vsyncpa [#allocation6], 1
    %2113 = vsyncpa [#allocation4], 1
    %s2114 = scalar_lea.sflag [#allocation4], 1
    %2115 = vsyncpa %s2114, 1

</llo_original>
